<compile_context>
chip_gen: v7x
topology: tpu7x:2x2x1
jax: 0.10.0
libtpu: 0.0.40
codegen_flags: <defaults>
</compile_context>

<pallas_src>
import math

import jax
import jax.numpy as jnp
from jax.experimental import pallas as pl
from jax.experimental.pallas import tpu as pltpu


def _round_up(v, m):
    return ((v + m - 1) // m) * m


def _derive_avg_pool(feature_size, spatial, dim_in_decoder_arg):
    """Mirror auxillary_conv_classifier.__init__ pooling derivation ('avg' path)."""
    ks_h, ks_w = 1, 1
    dim_out_h, dim_out_w = spatial, spatial
    dim_in_decoder = feature_size * dim_out_h * dim_out_w
    while dim_in_decoder > dim_in_decoder_arg and ks_h < spatial:
        ks_h *= 2
        dim_out_h = math.ceil(spatial / ks_h)
        dim_in_decoder = feature_size * dim_out_h * dim_out_w
        if dim_in_decoder > dim_in_decoder_arg:
            ks_w *= 2
            dim_out_w = math.ceil(spatial / ks_w)
            dim_in_decoder = feature_size * dim_out_h * dim_out_w
    if ks_h > 1 or ks_w > 1:
        pad_h = ks_h * (dim_out_h - spatial // ks_h) // 2
        pad_w = ks_w * (dim_out_w - spatial // ks_w) // 2
    else:
        pad_h = pad_w = 0
    return ks_h, ks_w, pad_h, pad_w, dim_out_h, dim_out_w, dim_in_decoder


def _pool_matrix(length, k, pad, length_out, dtype=jnp.float32):
    """(length, length_out) matrix P s.t. pooled = x @ P  (AvgPool1d, stride=k,
    count_include_pad=True, floor mode -- the nn.AvgPool2d defaults)."""
    h = jnp.arange(length)[:, None]
    oh = jnp.arange(length_out)[None, :]
    start = oh * k - pad
    hit = (h >= start) & (h < start + k)
    return hit.astype(dtype) / float(k)


def prepare_aux_classifier(weight, bias, *, feature_size, in_size, dim_in_decoder_arg,
                           num_classes, mxu_dtype=jnp.bfloat16, fold_pool_max=4):
    """One-time (per weight-update) parameter prep -- hoisted out of the forward path so the
    pool fold / padding work never re-runs inside a jitted training step."""
    ks_h, ks_w, pad_h, pad_w, dh, dw, dim_in_decoder = _derive_avg_pool(
        feature_size, in_size, dim_in_decoder_arg)
    Ho = (in_size + 2 * pad_h - ks_h) // ks_h + 1
    Wo = (in_size + 2 * pad_w - ks_w) // ks_w + 1
    assert (Ho, Wo) == (dh, dw) and feature_size * Ho * Wo == dim_in_decoder
    assert weight.shape == (num_classes, dim_in_decoder)
    assert bias.shape == (num_classes,)

    n_pad = _round_up(num_classes, 128)                    # lane-dense output width
    w_p = jnp.zeros((n_pad, dim_in_decoder), jnp.float32).at[:num_classes].set(
        weight.astype(jnp.float32))
    b_p = jnp.zeros((1, n_pad), jnp.float32).at[0, :num_classes].set(
        bias.astype(jnp.float32))

    fold_pool = (ks_h * ks_w) <= fold_pool_max             # fold only small pools into the weight
    if fold_pool and (ks_h > 1 or ks_w > 1):
        pool_h = _pool_matrix(in_size, ks_h, pad_h, Ho)    # (H, Ho)
        pool_w = _pool_matrix(in_size, ks_w, pad_w, Wo)    # (W, Wo)
        wn = w_p.reshape(n_pad, feature_size, Ho, Wo)
        # Fold avg-pool + flatten into the weight; pre-transposed to (K, Npad).
        w_eff = jnp.einsum("ncij,hi,wj->chwn", wn, pool_h, pool_w)
        K = feature_size * in_size * in_size
        w_k = w_eff.reshape(K, n_pad)
    else:
        # Identity pool, or a large pool that stays outside the weight.
        K = dim_in_decoder
        w_k = w_p.T

    return dict(
        w_k=w_k.astype(mxu_dtype), b_p=b_p, fold_pool=fold_pool,
        K=K, n_pad=n_pad, num_classes=num_classes,
        feature_size=feature_size, in_size=in_size,
        ks_h=ks_h, ks_w=ks_w, pad_h=pad_h, pad_w=pad_w, Ho=Ho, Wo=Wo,
    )


def _pooled_classifier_kernel(x_ref, w_ref, b_ref, o_ref):
    # x_ref: (tB, K) f32   w_ref: (K, Npad) mxu_dtype   b_ref: (1, Npad) f32   o_ref: (tB, Npad) f32
    x = x_ref[...].astype(w_ref.dtype)      # in-kernel cast: no extra wrapper HBM pass over x
    o_ref[...] = jax.lax.dot_general(
        x, w_ref[...],
        dimension_numbers=(((1,), (0,)), ((), ())),
        preferred_element_type=jnp.float32,
    ) + b_ref[...]


def auxillary_conv_classifier_forward(x, params, *, batch_tile=128):
    """x: (B, C, H, W) f32.  Returns (out, loss_sim) like the torch module
    (loss_sim is None for loss_sup='pred')."""
    B, C, H, W = x.shape
    assert C == params["feature_size"] and H == W == params["in_size"]
    K, n_pad = params["K"], params["n_pad"]

    if params["fold_pool"]:
        x_flat = x.reshape(B, K)            # free row-major reshape, no HBM copy
    else:
        # Large derived pool: reduce x first (output is ks_h*ks_w smaller), then GEMM against the
        # unfolded weight.  TODO(synk): fuse this pool into the kernel to remove this small pass.
        ks_h, ks_w = params["ks_h"], params["ks_w"]
        pad_h, pad_w = params["pad_h"], params["pad_w"]
        Ho, Wo = params["Ho"], params["Wo"]
        xp = jnp.pad(x, ((0, 0), (0, 0), (pad_h, pad_h), (pad_w, pad_w)))
        xp = xp[:, :, : Ho * ks_h, : Wo * ks_w]
        pooled = xp.reshape(B, C, Ho, ks_h, Wo, ks_w).mean(axis=(3, 5))
        x_flat = pooled.reshape(B, K)

    # Batch tile: big (fills the MXU M dim), multiple of 8, never wider than the batch; keep the
    # grid >= 2 steps when the batch allows so the "parallel" axis feeds both v7x TensorCores.
    tB = max(8, (batch_tile // 8) * 8)
    B8 = _round_up(B, 8)
    if tB >= B8:
        tB = B8 if B8 < 16 else _round_up(B8 // 2, 8)
    grid = (pl.cdiv(B, tB),)                # ragged last tile handled by Pallas boundary masking

    # Explicit VMEM budget: 1x weight + 1x bias (single-buffered, grid-invariant)
    # + 2x x tile + 2x out tile, with headroom.  Capped at 64 MiB (v7x per-TC VMEM).
    w_bytes = K * n_pad * jnp.dtype(params["w_k"].dtype).itemsize
    x_bytes = tB * K * jnp.dtype(x_flat.dtype).itemsize
    o_bytes = tB * n_pad * 4
    need = w_bytes + 4 * n_pad + 2 * x_bytes + 2 * o_bytes
    vmem_limit = int(min(64 * 2**20, max(32 * 2**20, 2 * need)))

    def build(single_buffer_params):
        extra = dict(pipeline_mode=pl.Buffered(1)) if single_buffer_params else {}
        return pl.pallas_call(
            _pooled_classifier_kernel,
            out_shape=jax.ShapeDtypeStruct((B, n_pad), jnp.float32),
            grid=grid,
            in_specs=[
                pl.BlockSpec((tB, K), lambda i: (i, 0)),               # x tile: streamed
                pl.BlockSpec((K, n_pad), lambda i: (0, 0), **extra),   # weight: VMEM-resident
                pl.BlockSpec((1, n_pad), lambda i: (0, 0), **extra),   # bias:   VMEM-resident
            ],
            out_specs=pl.BlockSpec((tB, n_pad), lambda i: (i, 0)),
            compiler_params=pltpu.CompilerParams(
                dimension_semantics=("parallel",),
                vmem_limit_bytes=vmem_limit,
            ),
        )

    try:
        out = build(True)(x_flat, params["w_k"], params["b_p"])
    except Exception:
        # Fallback for jax versions where pipeline_mode=pl.Buffered(1) is unsupported.
        out = build(False)(x_flat, params["w_k"], params["b_p"])

    out = out[:, : params["num_classes"]]
    return out, None                         # loss_sim is None for loss_sup='pred'


def auxillary_conv_classifier_ref(x, weight, bias, *, dim_in_decoder_arg, num_classes):
    """Pure-JAX reference mirroring the torch forward (explicit pool -> flatten -> linear)."""
    B, C, H, W = x.shape
    ks_h, ks_w, pad_h, pad_w, _, _, _ = _derive_avg_pool(C, H, dim_in_decoder_arg)
    xp = jnp.pad(x, ((0, 0), (0, 0), (pad_h, pad_h), (pad_w, pad_w)))
    Ho = (H + 2 * pad_h - ks_h) // ks_h + 1
    Wo = (W + 2 * pad_w - ks_w) // ks_w + 1
    xp = xp[:, :, : Ho * ks_h, : Wo * ks_w]
    pooled = xp.reshape(B, C, Ho, ks_h, Wo, ks_w).mean(axis=(3, 5))
    flat = pooled.reshape(B, -1)
    out = flat @ weight.T + bias
    return out, None


if __name__ == "__main__":
    # Small config consistent with the module (scaled-down defaults):
    #   input_features (channels) = 16, in_size (spatial) = 8,
    #   dim_in_decoder_arg = 256, num_classes = 10,
    #   n_conv = n_mlp = 0, bn = False, loss_sup = 'pred', pooling = 'avg'.
    C, S, num_classes, dim_arg = 16, 8, 10, 256
    B = 16

    ks_h, ks_w, pad_h, pad_w, dh, dw, dim_in_decoder = _derive_avg_pool(C, S, dim_arg)
    # -> AvgPool2d((2, 2), padding=(0, 0)), dim_in_decoder = 256, matching the torch __init__ math.

    key = jax.random.PRNGKey(0)
    kx, kw, kb = jax.random.split(key, 3)
    x = jax.random.normal(kx, (B, C, S, S), dtype=jnp.float32)
    # NOTE: the torch module zero-inits classifier.weight; random weights are used here so the
    # check actually exercises the matmul path (forward semantics are identical).
    weight = 0.05 * jax.random.normal(kw, (num_classes, dim_in_decoder), dtype=jnp.float32)
    bound = 1.0 / (dim_in_decoder ** 0.5)
    bias = jax.random.uniform(kb, (num_classes,), dtype=jnp.float32,
                              minval=-bound, maxval=bound)

    ref, _ = auxillary_conv_classifier_ref(
        x, weight, bias, dim_in_decoder_arg=dim_arg, num_classes=num_classes)

    # f32 MXU operands: tight check against the f32 reference.
    params_f32 = prepare_aux_classifier(
        weight, bias, feature_size=C, in_size=S, dim_in_decoder_arg=dim_arg,
        num_classes=num_classes, mxu_dtype=jnp.float32)
    out_f32, loss_sim = auxillary_conv_classifier_forward(x, params_f32)
    out_f32 = jax.block_until_ready(out_f32)
    assert out_f32.shape == (B, num_classes)
    assert loss_sim is None
    assert jnp.allclose(out_f32, ref, atol=2e-3, rtol=2e-3), "f32 mismatch vs reference"

    # bf16 MXU operands (the fast path on v5e/v6e/v7x): f32 accumulation, looser tolerance.
    params_bf16 = prepare_aux_classifier(
        weight, bias, feature_size=C, in_size=S, dim_in_decoder_arg=dim_arg,
        num_classes=num_classes, mxu_dtype=jnp.bfloat16)
    out_bf16, _ = auxillary_conv_classifier_forward(x, params_bf16)
    out_bf16 = jax.block_until_ready(out_bf16)
    assert out_bf16.shape == (B, num_classes)
    assert jnp.allclose(out_bf16, ref, atol=2e-2, rtol=2e-2), "bf16 mismatch vs reference"

    print("KERNEL_OK")
</pallas_src>

<mosaic_0001>
module attributes {stable_mosaic.version = 11 : i64} {
  func.func @_pooled_classifier_kernel(%arg0: i32, %arg1: memref<8x1024xf32, #tpu.memory_space<vmem>>, %arg2: memref<1024x128xf32, #tpu.memory_space<vmem>>, %arg3: memref<1x128xf32, #tpu.memory_space<vmem>>, %arg4: memref<8x128xf32, #tpu.memory_space<vmem>>) attributes {dimension_semantics = [#tpu.dimension_semantics<parallel>], iteration_bounds = array<i64: 2>, scalar_prefetch = 0 : i64, scratch_operands = 0 : i64, tpu.core_type = #tpu.core_type<tc>, window_params = [{transform_indices = @transform_0, window_bounds = array<i64: 8, 1024>}, {pipeline_mode = #tpu.pipeline_mode<synchronous>, transform_indices = @transform_1, window_bounds = array<i64: 1024, 128>}, {pipeline_mode = #tpu.pipeline_mode<synchronous>, transform_indices = @transform_2, window_bounds = array<i64: 1, 128>}, {transform_indices = @transform_3, window_bounds = array<i64: 8, 128>}]} {
    %c0 = arith.constant 0 : index
    %c0_0 = arith.constant 0 : index
    %0 = vector.load %arg1[%c0, %c0_0] : memref<8x1024xf32, #tpu.memory_space<vmem>>, vector<8x1024xf32>
    %c0_1 = arith.constant 0 : index
    %c0_2 = arith.constant 0 : index
    %1 = vector.load %arg2[%c0_1, %c0_2] : memref<1024x128xf32, #tpu.memory_space<vmem>>, vector<1024x128xf32>
    %cst = arith.constant dense<0.000000e+00> : vector<8x128xf32>
    %2 = tpu.matmul %0, %1, %cst {dimension_numbers = #tpu.dot_dimension_numbers<[1], [0], [0], [1], [0, 0, 1, 1], [], []>} : vector<8x1024xf32>, vector<1024x128xf32>, vector<8x128xf32> -> vector<8x128xf32>
    %c0_3 = arith.constant 0 : index
    %c0_4 = arith.constant 0 : index
    %3 = vector.load %arg3[%c0_3, %c0_4] : memref<1x128xf32, #tpu.memory_space<vmem>>, vector<1x128xf32>
    %4 = vector.broadcast %3 : vector<1x128xf32> to vector<8x128xf32>
    %5 = arith.addf %2, %4 : vector<8x128xf32>
    %c0_5 = arith.constant 0 : index
    %c0_6 = arith.constant 0 : index
    %6 = vector.load %arg4[%c0_5, %c0_6] : memref<8x128xf32, #tpu.memory_space<vmem>>, vector<8x128xf32>
    tpu.vector_store %arg4[%c0_5, %c0_6], %5 {strides = array<i32>} : memref<8x128xf32, #tpu.memory_space<vmem>>, vector<8x128xf32>,
    return
  }
  func.func @transform_0(%arg0: i32) -> (i32, i32) {
    %c0_i32 = arith.constant 0 : i32
    %c0_i32_0 = arith.constant 0 : i32
    return %arg0, %c0_i32 : i32, i32
  }
  func.func @transform_1(%arg0: i32) -> (i32, i32) {
    %c0_i32 = arith.constant 0 : i32
    %c0_i32_0 = arith.constant 0 : i32
    %c0_i32_1 = arith.constant 0 : i32
    return %c0_i32, %c0_i32_0 : i32, i32
  }
  func.func @transform_2(%arg0: i32) -> (i32, i32) {
    %c0_i32 = arith.constant 0 : i32
    %c0_i32_0 = arith.constant 0 : i32
    %c0_i32_1 = arith.constant 0 : i32
    return %c0_i32, %c0_i32_0 : i32, i32
  }
  func.func @transform_3(%arg0: i32) -> (i32, i32) {
    %c0_i32 = arith.constant 0 : i32
    %c0_i32_0 = arith.constant 0 : i32
    return %arg0, %c0_i32 : i32, i32
  }
}

module attributes {stable_mosaic.version = 11 : i64} {
  func.func @_pooled_classifier_kernel(%arg0: i32, %arg1: memref<8x1024xf32, #tpu.memory_space<vmem>>, %arg2: memref<1024x128xf32, #tpu.memory_space<vmem>>, %arg3: memref<1x128xf32, #tpu.memory_space<vmem>>, %arg4: memref<8x128xf32, #tpu.memory_space<vmem>>) attributes {dimension_semantics = [#tpu.dimension_semantics<parallel>], iteration_bounds = array<i64: 2>, scalar_prefetch = 0 : i64, scratch_operands = 0 : i64, tpu.core_type = #tpu.core_type<tc>, window_params = [{transform_indices = @transform_0, window_bounds = array<i64: 8, 1024>}, {pipeline_mode = #tpu.pipeline_mode<synchronous>, transform_indices = @transform_1, window_bounds = array<i64: 1024, 128>}, {pipeline_mode = #tpu.pipeline_mode<synchronous>, transform_indices = @transform_2, window_bounds = array<i64: 1, 128>}, {transform_indices = @transform_3, window_bounds = array<i64: 8, 128>}]} {
    %c0 = arith.constant 0 : index
    %c0_0 = arith.constant 0 : index
    %0 = vector.load %arg1[%c0, %c0_0] : memref<8x1024xf32, #tpu.memory_space<vmem>>, vector<8x1024xf32>
    %c0_1 = arith.constant 0 : index
    %c0_2 = arith.constant 0 : index
    %1 = vector.load %arg2[%c0_1, %c0_2] : memref<1024x128xf32, #tpu.memory_space<vmem>>, vector<1024x128xf32>
    %cst = arith.constant dense<0.000000e+00> : vector<8x128xf32>
    %2 = tpu.matmul %0, %1, %cst {dimension_numbers = #tpu.dot_dimension_numbers<[1], [0], [0], [1], [0, 0, 1, 1], [], []>} : vector<8x1024xf32>, vector<1024x128xf32>, vector<8x128xf32> -> vector<8x128xf32>
    %c0_3 = arith.constant 0 : index
    %c0_4 = arith.constant 0 : index
    %3 = vector.load %arg3[%c0_3, %c0_4] : memref<1x128xf32, #tpu.memory_space<vmem>>, vector<1x128xf32>
    %4 = vector.broadcast %3 : vector<1x128xf32> to vector<8x128xf32>
    %5 = arith.addf %2, %4 : vector<8x128xf32>
    %c0_5 = arith.constant 0 : index
    %c0_6 = arith.constant 0 : index
    %6 = vector.load %arg4[%c0_5, %c0_6] : memref<8x128xf32, #tpu.memory_space<vmem>>, vector<8x128xf32>
    tpu.vector_store %arg4[%c0_5, %c0_6], %5 {strides = array<i32>} : memref<8x128xf32, #tpu.memory_space<vmem>>, vector<8x128xf32>,
    return
  }
  func.func @transform_0(%arg0: i32) -> (i32, i32) {
    %c0_i32 = arith.constant 0 : i32
    %c0_i32_0 = arith.constant 0 : i32
    return %arg0, %c0_i32 : i32, i32
  }
  func.func @transform_1(%arg0: i32) -> (i32, i32) {
    %c0_i32 = arith.constant 0 : i32
    %c0_i32_0 = arith.constant 0 : i32
    %c0_i32_1 = arith.constant 0 : i32
    return %c0_i32, %c0_i32_0 : i32, i32
  }
  func.func @transform_2(%arg0: i32) -> (i32, i32) {
    %c0_i32 = arith.constant 0 : i32
    %c0_i32_0 = arith.constant 0 : i32
    %c0_i32_1 = arith.constant 0 : i32
    return %c0_i32, %c0_i32_0 : i32, i32
  }
  func.func @transform_3(%arg0: i32) -> (i32, i32) {
    %c0_i32 = arith.constant 0 : i32
    %c0_i32_0 = arith.constant 0 : i32
    return %arg0, %c0_i32 : i32, i32
  }
}

</mosaic_0001>

<llo_original>
// kernel: tpu_custom_call.1
$region0: #{tpu_custom_call.1}
  #allocation0 [shape = 'u32[]', space=smem, size = 0x4, offset = 0x4, fixed_abs, tag = 'smem constant byte address 0x4 - core index']
  #allocation1 [shape = 'u32[144,128]{1,0:T(1,128)}', space=vmem, size = 0x12000, scoped, tag = 'internal scratch']
  %s0 = inlined_call_operand.hbm [shape: f32[16,1024], index: 0, kind: input, shape index: {}]
  %s1 = inlined_call_operand.hbm [shape: f32[1024,128], index: 1, kind: input, shape index: {}]
  %s2 = inlined_call_operand.vmem [shape: f32[1,128], index: 2, kind: input, shape index: {}]
  %s3 = inlined_call_operand.hbm [shape: f32[16,128], index: 3, kind: output, shape index: {}]
  %s4 = sld [smem:[#allocation0]]
  $region53: #{tpu_custom_call.1} parent=0
    _
  %s6 = ssub.s32 1, %s4
  %s7 = scalar_select 0, %s6, %s4
  $region1: #{tpu_custom_call.1} parent=0
    #allocation2 [shape = 'u8[65536]{0}', space=vmem, size = 0x10000, scoped, tag = 'input window, operand 0']
    #allocation3 [shape = 's32[2]{0}', space=sflag, size = 0x8, scoped, tag = 'scoped memory for tpu_custom_call.1']
    #allocation4 [shape = 's32[2]{0}', space=sflag, size = 0x8, scoped, tag = 'scoped memory for tpu_custom_call.1']
    #allocation5 [shape = 'u8[524288]{0}', space=vmem, size = 0x80000, scoped, tag = 'input window, operand 1, single buffered']
    #allocation6 [shape = 's32[1]{0}', space=sflag, size = 0x4, scoped, tag = 'scoped memory for tpu_custom_call.1']
    #allocation7 [shape = 'u8[8192]{0}', space=vmem, size = 0x2000, scoped, tag = 'output window, operand 0']
    %8 = vsyncpa [#allocation3], 0
    %s9 = scalar_lea.sflag [#allocation3], 1
    %10 = vsyncpa %s9, 0
    %11 = vsyncpa [#allocation6], 0
    %12 = vsyncpa [#allocation4], 0
    %s13 = scalar_lea.sflag [#allocation4], 1
    %14 = vsyncpa %s13, 0
    loop: start=0, step=1, limit=4
    $region2: #{tpu_custom_call.1} parent=1 // loop_pre_header
      _
    $region3: #{tpu_custom_call.1} parent=1 // loop_header
      %s16 = sphi 0, %s20
      %p17 = scmp.ge.s32.totalorder %s16, 4
      %s26 = sphi 0, %s28
      %s29 = sphi 0, %s26
      %s30 = sphi 0, %s29
      %s46 = sphi 0, %s30
      %s50 = sphi 0, %s50
      %s52 = sphi 0, %s50
      %s53 = sphi 0, %s52
      %s67 = sphi 0, %s53
      %s71 = sphi 0, %s71
      %s73 = sphi 0, %s71
      %s74 = sphi 0, %s73
      %s88 = sphi 0, %s74
      %s94 = sphi 0, %s96
      %s97 = sphi 0, %s94
      %s98 = sphi 0, %s97
      %s114 = sphi 0, %s98
    $region4: #{tpu_custom_call.1} parent=1 // loop_header_branch
      %19 = sbr.rel (%p17) target = $region8
    $region5: #{tpu_custom_call.1} parent=1 // loop_body
      %s21 = ssub.s32 %s16, 1
      %s22 = ssub.s32 %s16, 2
      %s23 = sadd.s32 %s16, 1
      %s24 = ssub.s32 %s16, %s23
      %p25 = scmp.eq.s32.totalorder %s24, 0
      %s27 = sadd.s32 %s26, 1
      %s28 = scalar_select %p25, %s26, %s27
      %p31 = pneg %p25
      %p32 = scmp.eq.s32.totalorder %s16, 1
      %p33 = por %p31, %p32
      %p34 = scmp.ne.s32.totalorder %s26, %s29
      %p35 = scmp.eq.s32.totalorder %s16, 0
      %p36 = por %p34, %p35
      %p37 = scmp.ne.s32.totalorder %s26, %s29
      %p38 = scmp.eq.s32.totalorder %s21, 1
      %p39 = por %p37, %p38
      %p40 = scmp.ne.s32.totalorder %s29, %s30
      %p41 = scmp.eq.s32.totalorder %s21, 0
      %p42 = por %p40, %p41
      %p43 = scmp.ne.s32.totalorder %s29, %s30
      %p44 = scmp.eq.s32.totalorder %s22, 1
      %p45 = por %p43, %p44
      %p47 = scmp.ne.s32.totalorder %s30, %s46
      %p48 = scmp.eq.s32.totalorder %s22, 0
      %p49 = por %p47, %p48
      %s51 = sadd.s32 %s50, 1
      %p54 = scmp.eq.s32.totalorder %s16, 1
      %p55 = scmp.ne.s32.totalorder %s50, %s52
      %p56 = scmp.eq.s32.totalorder %s16, 0
      %p57 = por %p55, %p56
      %p58 = scmp.ne.s32.totalorder %s50, %s52
      %p59 = scmp.eq.s32.totalorder %s21, 1
      %p60 = por %p58, %p59
      %p61 = scmp.ne.s32.totalorder %s52, %s53
      %p62 = scmp.eq.s32.totalorder %s21, 0
      %p63 = por %p61, %p62
      %p64 = scmp.ne.s32.totalorder %s52, %s53
      %p65 = scmp.eq.s32.totalorder %s22, 1
      %p66 = por %p64, %p65
      %p68 = scmp.ne.s32.totalorder %s53, %s67
      %p69 = scmp.eq.s32.totalorder %s22, 0
      %p70 = por %p68, %p69
      %s72 = sadd.s32 %s71, 1
      %p75 = scmp.eq.s32.totalorder %s16, 1
      %p76 = scmp.ne.s32.totalorder %s71, %s73
      %p77 = scmp.eq.s32.totalorder %s16, 0
      %p78 = por %p76, %p77
      %p79 = scmp.ne.s32.totalorder %s71, %s73
      %p80 = scmp.eq.s32.totalorder %s21, 1
      %p81 = por %p79, %p80
      %p82 = scmp.ne.s32.totalorder %s73, %s74
      %p83 = scmp.eq.s32.totalorder %s21, 0
      %p84 = por %p82, %p83
      %p85 = scmp.ne.s32.totalorder %s73, %s74
      %p86 = scmp.eq.s32.totalorder %s22, 1
      %p87 = por %p85, %p86
      %p89 = scmp.ne.s32.totalorder %s74, %s88
      %p90 = scmp.eq.s32.totalorder %s22, 0
      %p91 = por %p89, %p90
      %s92 = ssub.s32 %s16, %s23
      %p93 = scmp.eq.s32.totalorder %s92, 0
      %s95 = sadd.s32 %s94, 1
      %s96 = scalar_select %p93, %s94, %s95
      %p99 = pneg %p93
      %p100 = scmp.eq.s32.totalorder %s16, 1
      %p101 = por %p99, %p100
      %p102 = scmp.ne.s32.totalorder %s94, %s97
      %p103 = scmp.eq.s32.totalorder %s16, 0
      %p104 = por %p102, %p103
      %p105 = scmp.ne.s32.totalorder %s94, %s97
      %p106 = scmp.eq.s32.totalorder %s21, 1
      %p107 = por %p105, %p106
      %p108 = scmp.ne.s32.totalorder %s97, %s98
      %p109 = scmp.eq.s32.totalorder %s21, 0
      %p110 = por %p108, %p109
      %p111 = scmp.ne.s32.totalorder %s97, %s98
      %p112 = scmp.eq.s32.totalorder %s22, 1
      %p113 = por %p111, %p112
      %p115 = scmp.ne.s32.totalorder %s98, %s114
      %p116 = scmp.eq.s32.totalorder %s22, 0
      %p117 = por %p115, %p116
      %p118 = scmp.le.s32.totalorder 1, %s16
      %p119 = scmp.lt.s32.totalorder %s16, 3
      %p120 = pnand %p118, %p119
      %p121 = pneg %p120
      // Predicated region
      $region9: #{tpu_custom_call.1} parent=5 // pred_check
        _
      $region10: #{tpu_custom_call.1} parent=5 // pred_check_branch
        %123 = sbr.rel (%p120) target = $region12
      $region11: #{tpu_custom_call.1} parent=5 // pred_region
        %s124 = ssub.s32 %s16, 1
        // Predicated region
        $region13: #{tpu_custom_call.1} parent=11 // pred_check
          %p125 = pneg %p63
        $region14: #{tpu_custom_call.1} parent=11 // pred_check_branch
          %127 = sbr.rel (%p125) target = $region16
        $region15: #{tpu_custom_call.1} parent=11 // pred_region
          %s129 = ssub.s32 16384, 16384
          %130 = vsyncadd [#allocation6], %s129
          %s131 = sshll.u32 [#allocation5], 4
          %s132 = int_to_ptr.vmem [resolvable:$true] %s131
          %137 = dma.hbm_to_vmem [thread:$0]  %s1, 16384, %s132, [#allocation6], 128, 128, 8
        $region16: #{tpu_custom_call.1} parent=11 // pred_fallthru
          _
        // Predicated region
        $region17: #{tpu_custom_call.1} parent=11 // pred_check
          %p138 = pneg %p84
        $region18: #{tpu_custom_call.1} parent=11 // pred_check_branch
          %140 = sbr.rel (%p138) target = $region20
        $region19: #{tpu_custom_call.1} parent=11 // pred_region
          _
        $region20: #{tpu_custom_call.1} parent=11 // pred_fallthru
          _
      $region12: #{tpu_custom_call.1} parent=5 // pred_fallthru
        _
      %p141 = scmp.lt.s32.totalorder %s16, 2
      // Predicated region
      $region21: #{tpu_custom_call.1} parent=5 // pred_check
        %p142 = pneg %p141
      $region22: #{tpu_custom_call.1} parent=5 // pred_check_branch
        %144 = sbr.rel (%p142) target = $region24
      $region23: #{tpu_custom_call.1} parent=5 // pred_region
        // Predicated region
        $region25: #{tpu_custom_call.1} parent=23 // pred_check
          %p145 = pneg %p36
        $region26: #{tpu_custom_call.1} parent=23 // pred_check_branch
          %147 = sbr.rel (%p145) target = $region28
        $region27: #{tpu_custom_call.1} parent=23 // pred_region
          %s148 = sand.u32 %s26, 1
          %s149 = scalar_lea.sflag [#allocation3], %s148
          %s150 = sand.u32 %s26, 1
          %s151 = smul.addr %s150, 64
          %s152 = scalar_lea.vmem [#allocation2], %s151
          %s154 = ssub.s32 1024, 1024
          %155 = vsyncadd %s149, %s154
          %s156 = smul.addr %s16, 8
          %s157 = smul.addr %s156, 128
          %s158 = scalar_lea.hbm %s0, %s157
          %s160 = sshll.u32 %s152, 4
          %s161 = int_to_ptr.vmem [resolvable:$true] %s160
          %163 = dma.hbm_to_vmem [thread:$0]  %s158, 1024, %s161, %s149
        $region28: #{tpu_custom_call.1} parent=23 // pred_fallthru
          _
      $region24: #{tpu_custom_call.1} parent=5 // pred_fallthru
        _
      %p164 = scmp.le.s32.totalorder 1, %s16
      %p165 = scmp.lt.s32.totalorder %s16, 3
      %p166 = pnand %p164, %p165
      %p167 = pneg %p166
      // Predicated region
      $region29: #{tpu_custom_call.1} parent=5 // pred_check
        _
      $region30: #{tpu_custom_call.1} parent=5 // pred_check_branch
        %169 = sbr.rel (%p166) target = $region32
      $region31: #{tpu_custom_call.1} parent=5 // pred_region
        %s170 = ssub.s32 %s16, 1
        %s171 = sand.u32 %s29, 1
        %s172 = scalar_lea.sflag [#allocation3], %s171
        %s173 = sand.u32 %s29, 1
        %s174 = smul.addr %s173, 64
        %s175 = scalar_lea.vmem [#allocation2], %s174
        // Predicated region
        $region33: #{tpu_custom_call.1} parent=31 // pred_check
          %p176 = pneg %p42
        $region34: #{tpu_custom_call.1} parent=31 // pred_check_branch
          %178 = sbr.rel (%p176) target = $region36
        $region35: #{tpu_custom_call.1} parent=31 // pred_region
          %179 = dma.done %s172, 1024
        $region36: #{tpu_custom_call.1} parent=31 // pred_fallthru
          _
        // Predicated region
        $region37: #{tpu_custom_call.1} parent=31 // pred_check
          %p180 = pneg %p63
        $region38: #{tpu_custom_call.1} parent=31 // pred_check_branch
          %182 = sbr.rel (%p180) target = $region40
        $region39: #{tpu_custom_call.1} parent=31 // pred_region
          %183 = dma.done [#allocation6], 16384
        $region40: #{tpu_custom_call.1} parent=31 // pred_fallthru
          _
        %s184 = sand.u32 %s29, 1
        %s185 = scalar_lea.sflag [#allocation3], %s184
        %s186 = sand.u32 %s29, 1
        %s187 = smul.addr %s186, 64
        %s188 = scalar_lea.vmem [#allocation2], %s187
        %p189 = pneg %p42
        %p190 = pneg %p39
        %p191 = pneg %p63
        %p192 = pneg %p60
        %p193 = pneg %p84
        %p194 = pneg %p81
        %p195 = pneg %p110
        %p196 = pneg %p107
        %s197 = sand.u32 %s97, 1
        %s198 = scalar_lea.sflag [#allocation4], %s197
        %s199 = sand.u32 %s97, 1
        %s200 = smul.addr %s199, 8
        %s201 = scalar_lea.vmem [#allocation7], %s200
        %v202 = vld [vmem:[%s175] sm:$0xff]
        %v203 = vld [vmem:[%s175 + $0x8] sm:$0xff]
        %v204 = vld [vmem:[%s175 + $0x10] sm:$0xff]
        %v205 = vld [vmem:[%s175 + $0x18] sm:$0xff]
        %v206 = vld [vmem:[%s175 + $0x20] sm:$0xff]
        %v207 = vld [vmem:[%s175 + $0x28] sm:$0xff]
        %v208 = vld [vmem:[%s175 + $0x30] sm:$0xff]
        %v209 = vld [vmem:[%s175 + $0x38] sm:$0xff]
        %v210 = vld [vmem:[#allocation5] sm:$0xff]
        %v211 = vld [vmem:[#allocation5 + $0x8] sm:$0xff]
        %v212 = vld [vmem:[#allocation5 + $0x10] sm:$0xff]
        %v213 = vld [vmem:[#allocation5 + $0x18] sm:$0xff]
        %v214 = vld [vmem:[#allocation5 + $0x20] sm:$0xff]
        %v215 = vld [vmem:[#allocation5 + $0x28] sm:$0xff]
        %v216 = vld [vmem:[#allocation5 + $0x30] sm:$0xff]
        %v217 = vld [vmem:[#allocation5 + $0x38] sm:$0xff]
        %v218 = vld [vmem:[#allocation5 + $0x40] sm:$0xff]
        %v219 = vld [vmem:[#allocation5 + $0x48] sm:$0xff]
        %v220 = vld [vmem:[#allocation5 + $0x50] sm:$0xff]
        %v221 = vld [vmem:[#allocation5 + $0x58] sm:$0xff]
        %v222 = vld [vmem:[#allocation5 + $0x60] sm:$0xff]
        %v223 = vld [vmem:[#allocation5 + $0x68] sm:$0xff]
        %v224 = vld [vmem:[#allocation5 + $0x70] sm:$0xff]
        %v225 = vld [vmem:[#allocation5 + $0x78] sm:$0xff]
        %v226 = vld [vmem:[#allocation5 + $0x80] sm:$0xff]
        %v227 = vld [vmem:[#allocation5 + $0x88] sm:$0xff]
        %v228 = vld [vmem:[#allocation5 + $0x90] sm:$0xff]
        %v229 = vld [vmem:[#allocation5 + $0x98] sm:$0xff]
        %v230 = vld [vmem:[#allocation5 + $0xa0] sm:$0xff]
        %v231 = vld [vmem:[#allocation5 + $0xa8] sm:$0xff]
        %v232 = vld [vmem:[#allocation5 + $0xb0] sm:$0xff]
        %v233 = vld [vmem:[#allocation5 + $0xb8] sm:$0xff]
        %v234 = vld [vmem:[#allocation5 + $0xc0] sm:$0xff]
        %v235 = vld [vmem:[#allocation5 + $0xc8] sm:$0xff]
        %v236 = vld [vmem:[#allocation5 + $0xd0] sm:$0xff]
        %v237 = vld [vmem:[#allocation5 + $0xd8] sm:$0xff]
        %v238 = vld [vmem:[#allocation5 + $0xe0] sm:$0xff]
        %v239 = vld [vmem:[#allocation5 + $0xe8] sm:$0xff]
        %v240 = vld [vmem:[#allocation5 + $0xf0] sm:$0xff]
        %v241 = vld [vmem:[#allocation5 + $0xf8] sm:$0xff]
        %v242 = vld [vmem:[#allocation5 + $0x100] sm:$0xff]
        %v243 = vld [vmem:[#allocation5 + $0x108] sm:$0xff]
        %v244 = vld [vmem:[#allocation5 + $0x110] sm:$0xff]
        %v245 = vld [vmem:[#allocation5 + $0x118] sm:$0xff]
        %v246 = vld [vmem:[#allocation5 + $0x120] sm:$0xff]
        %v247 = vld [vmem:[#allocation5 + $0x128] sm:$0xff]
        %v248 = vld [vmem:[#allocation5 + $0x130] sm:$0xff]
        %v249 = vld [vmem:[#allocation5 + $0x138] sm:$0xff]
        %v250 = vld [vmem:[#allocation5 + $0x140] sm:$0xff]
        %v251 = vld [vmem:[#allocation5 + $0x148] sm:$0xff]
        %v252 = vld [vmem:[#allocation5 + $0x150] sm:$0xff]
        %v253 = vld [vmem:[#allocation5 + $0x158] sm:$0xff]
        %v254 = vld [vmem:[#allocation5 + $0x160] sm:$0xff]
        %v255 = vld [vmem:[#allocation5 + $0x168] sm:$0xff]
        %v256 = vld [vmem:[#allocation5 + $0x170] sm:$0xff]
        %v257 = vld [vmem:[#allocation5 + $0x178] sm:$0xff]
        %v258 = vld [vmem:[#allocation5 + $0x180] sm:$0xff]
        %v259 = vld [vmem:[#allocation5 + $0x188] sm:$0xff]
        %v260 = vld [vmem:[#allocation5 + $0x190] sm:$0xff]
        %v261 = vld [vmem:[#allocation5 + $0x198] sm:$0xff]
        %v262 = vld [vmem:[#allocation5 + $0x1a0] sm:$0xff]
        %v263 = vld [vmem:[#allocation5 + $0x1a8] sm:$0xff]
        %v264 = vld [vmem:[#allocation5 + $0x1b0] sm:$0xff]
        %v265 = vld [vmem:[#allocation5 + $0x1b8] sm:$0xff]
        %v266 = vld [vmem:[#allocation5 + $0x1c0] sm:$0xff]
        %v267 = vld [vmem:[#allocation5 + $0x1c8] sm:$0xff]
        %v268 = vld [vmem:[#allocation5 + $0x1d0] sm:$0xff]
        %v269 = vld [vmem:[#allocation5 + $0x1d8] sm:$0xff]
        %v270 = vld [vmem:[#allocation5 + $0x1e0] sm:$0xff]
        %v271 = vld [vmem:[#allocation5 + $0x1e8] sm:$0xff]
        %v272 = vld [vmem:[#allocation5 + $0x1f0] sm:$0xff]
        %v273 = vld [vmem:[#allocation5 + $0x1f8] sm:$0xff]
        %v274 = vld [vmem:[#allocation5 + $0x200] sm:$0xff]
        %v275 = vld [vmem:[#allocation5 + $0x208] sm:$0xff]
        %v276 = vld [vmem:[#allocation5 + $0x210] sm:$0xff]
        %v277 = vld [vmem:[#allocation5 + $0x218] sm:$0xff]
        %v278 = vld [vmem:[#allocation5 + $0x220] sm:$0xff]
        %v279 = vld [vmem:[#allocation5 + $0x228] sm:$0xff]
        %v280 = vld [vmem:[#allocation5 + $0x230] sm:$0xff]
        %v281 = vld [vmem:[#allocation5 + $0x238] sm:$0xff]
        %v282 = vld [vmem:[#allocation5 + $0x240] sm:$0xff]
        %v283 = vld [vmem:[#allocation5 + $0x248] sm:$0xff]
        %v284 = vld [vmem:[#allocation5 + $0x250] sm:$0xff]
        %v285 = vld [vmem:[#allocation5 + $0x258] sm:$0xff]
        %v286 = vld [vmem:[#allocation5 + $0x260] sm:$0xff]
        %v287 = vld [vmem:[#allocation5 + $0x268] sm:$0xff]
        %v288 = vld [vmem:[#allocation5 + $0x270] sm:$0xff]
        %v289 = vld [vmem:[#allocation5 + $0x278] sm:$0xff]
        %v290 = vld [vmem:[#allocation5 + $0x280] sm:$0xff]
        %v291 = vld [vmem:[#allocation5 + $0x288] sm:$0xff]
        %v292 = vld [vmem:[#allocation5 + $0x290] sm:$0xff]
        %v293 = vld [vmem:[#allocation5 + $0x298] sm:$0xff]
        %v294 = vld [vmem:[#allocation5 + $0x2a0] sm:$0xff]
        %v295 = vld [vmem:[#allocation5 + $0x2a8] sm:$0xff]
        %v296 = vld [vmem:[#allocation5 + $0x2b0] sm:$0xff]
        %v297 = vld [vmem:[#allocation5 + $0x2b8] sm:$0xff]
        %v298 = vld [vmem:[#allocation5 + $0x2c0] sm:$0xff]
        %v299 = vld [vmem:[#allocation5 + $0x2c8] sm:$0xff]
        %v300 = vld [vmem:[#allocation5 + $0x2d0] sm:$0xff]
        %v301 = vld [vmem:[#allocation5 + $0x2d8] sm:$0xff]
        %v302 = vld [vmem:[#allocation5 + $0x2e0] sm:$0xff]
        %v303 = vld [vmem:[#allocation5 + $0x2e8] sm:$0xff]
        %v304 = vld [vmem:[#allocation5 + $0x2f0] sm:$0xff]
        %v305 = vld [vmem:[#allocation5 + $0x2f8] sm:$0xff]
        %v306 = vld [vmem:[#allocation5 + $0x300] sm:$0xff]
        %v307 = vld [vmem:[#allocation5 + $0x308] sm:$0xff]
        %v308 = vld [vmem:[#allocation5 + $0x310] sm:$0xff]
        %v309 = vld [vmem:[#allocation5 + $0x318] sm:$0xff]
        %v310 = vld [vmem:[#allocation5 + $0x320] sm:$0xff]
        %v311 = vld [vmem:[#allocation5 + $0x328] sm:$0xff]
        %v312 = vld [vmem:[#allocation5 + $0x330] sm:$0xff]
        %v313 = vld [vmem:[#allocation5 + $0x338] sm:$0xff]
        %v314 = vld [vmem:[#allocation5 + $0x340] sm:$0xff]
        %v315 = vld [vmem:[#allocation5 + $0x348] sm:$0xff]
        %v316 = vld [vmem:[#allocation5 + $0x350] sm:$0xff]
        %v317 = vld [vmem:[#allocation5 + $0x358] sm:$0xff]
        %v318 = vld [vmem:[#allocation5 + $0x360] sm:$0xff]
        %v319 = vld [vmem:[#allocation5 + $0x368] sm:$0xff]
        %v320 = vld [vmem:[#allocation5 + $0x370] sm:$0xff]
        %v321 = vld [vmem:[#allocation5 + $0x378] sm:$0xff]
        %v322 = vld [vmem:[#allocation5 + $0x380] sm:$0xff]
        %v323 = vld [vmem:[#allocation5 + $0x388] sm:$0xff]
        %v324 = vld [vmem:[#allocation5 + $0x390] sm:$0xff]
        %v325 = vld [vmem:[#allocation5 + $0x398] sm:$0xff]
        %v326 = vld [vmem:[#allocation5 + $0x3a0] sm:$0xff]
        %v327 = vld [vmem:[#allocation5 + $0x3a8] sm:$0xff]
        %v328 = vld [vmem:[#allocation5 + $0x3b0] sm:$0xff]
        %v329 = vld [vmem:[#allocation5 + $0x3b8] sm:$0xff]
        %v330 = vld [vmem:[#allocation5 + $0x3c0] sm:$0xff]
        %v331 = vld [vmem:[#allocation5 + $0x3c8] sm:$0xff]
        %v332 = vld [vmem:[#allocation5 + $0x3d0] sm:$0xff]
        %v333 = vld [vmem:[#allocation5 + $0x3d8] sm:$0xff]
        %v334 = vld [vmem:[#allocation5 + $0x3e0] sm:$0xff]
        %v335 = vld [vmem:[#allocation5 + $0x3e8] sm:$0xff]
        %v336 = vld [vmem:[#allocation5 + $0x3f0] sm:$0xff]
        %v337 = vld [vmem:[#allocation5 + $0x3f8] sm:$0xff]
        %v338 = vld [vmem:[%s2] sm:$0x1]
        %v340 = vlaneseq
        %v341 = vshrl.u32 %v340, 7
        %v342 = vsub.s32 0, %v341
        %v343 = vrot.slane %v338, %v342
        %345 = vmatprep.subr.mxu0 0.0
        %346 = vmatpush1.msra.mxu0 %v210
        %347 = vmatprep.subr.mxu0 0.0
        %348 = vmatpush1.msra.mxu0 %v211
        %349 = vmatprep.subr.mxu0 0.0
        %350 = vmatpush1.msra.mxu0 %v212
        %351 = vmatprep.subr.mxu0 0.0
        %352 = vmatpush1.msra.mxu0 %v213
        %353 = vmatprep.subr.mxu0 0.0
        %354 = vmatpush1.msra.mxu0 %v214
        %355 = vmatprep.subr.mxu0 0.0
        %356 = vmatpush1.msra.mxu0 %v215
        %357 = vmatprep.subr.mxu0 0.0
        %358 = vmatpush1.msra.mxu0 %v216
        %359 = vmatprep.subr.mxu0 0.0
        %360 = vmatpush1.msra.mxu0 %v217
        %361 = vmatprep.subr.mxu0 0.0
        %362 = vmatpush1.msra.mxu0 %v218
        %363 = vmatprep.subr.mxu0 0.0
        %364 = vmatpush1.msra.mxu0 %v219
        %365 = vmatprep.subr.mxu0 0.0
        %366 = vmatpush1.msra.mxu0 %v220
        %367 = vmatprep.subr.mxu0 0.0
        %368 = vmatpush1.msra.mxu0 %v221
        %369 = vmatprep.subr.mxu0 0.0
        %370 = vmatpush1.msra.mxu0 %v222
        %371 = vmatprep.subr.mxu0 0.0
        %372 = vmatpush1.msra.mxu0 %v223
        %373 = vmatprep.subr.mxu0 0.0
        %374 = vmatpush1.msra.mxu0 %v224
        %375 = vmatprep.subr.mxu0 0.0
        %376 = vmatpush1.msra.mxu0 %v225
        %377 = vmatprep.subr.mxu0 0.0
        %378 = vmatpush1.msra.mxu0 %v226
        %379 = vmatprep.subr.mxu0 0.0
        %380 = vmatpush1.msra.mxu0 %v227
        %381 = vmatprep.subr.mxu0 0.0
        %382 = vmatpush1.msra.mxu0 %v228
        %383 = vmatprep.subr.mxu0 0.0
        %384 = vmatpush1.msra.mxu0 %v229
        %385 = vmatprep.subr.mxu0 0.0
        %386 = vmatpush1.msra.mxu0 %v230
        %387 = vmatprep.subr.mxu0 0.0
        %388 = vmatpush1.msra.mxu0 %v231
        %389 = vmatprep.subr.mxu0 0.0
        %390 = vmatpush1.msra.mxu0 %v232
        %391 = vmatprep.subr.mxu0 0.0
        %392 = vmatpush1.msra.mxu0 %v233
        %393 = vmatprep.subr.mxu0 0.0
        %394 = vmatpush1.msra.mxu0 %v234
        %395 = vmatprep.subr.mxu0 0.0
        %396 = vmatpush1.msra.mxu0 %v235
        %397 = vmatprep.subr.mxu0 0.0
        %398 = vmatpush1.msra.mxu0 %v236
        %399 = vmatprep.subr.mxu0 0.0
        %400 = vmatpush1.msra.mxu0 %v237
        %401 = vmatprep.subr.mxu0 0.0
        %402 = vmatpush1.msra.mxu0 %v238
        %403 = vmatprep.subr.mxu0 0.0
        %404 = vmatpush1.msra.mxu0 %v239
        %405 = vmatprep.subr.mxu0 0.0
        %406 = vmatpush1.msra.mxu0 %v240
        %407 = vmatprep.subr.mxu0 0.0
        %408 = vmatpush1.msra.mxu0 %v241
        %409 = vmatprep.mubr.f32.mxu0 %v203
        %410 = vmatmul.mubr.f32.gmra.mrb[0].mxu0 %v202
        %v411 = vpop.f32.mrb[0].mxu0
        %v412 = vadd.f32 %v343, %v411
        %v413 = vpop.f32.mrb[0].mxu0
        %414 = vdwg.mxu0
        %415 = vmatprep.subr.mxu0 0.0
        %416 = vmatpush1.msra.mxu0 %v242
        %417 = vmatprep.subr.mxu0 0.0
        %418 = vmatpush1.msra.mxu0 %v243
        %419 = vmatprep.subr.mxu0 0.0
        %420 = vmatpush1.msra.mxu0 %v244
        %421 = vmatprep.subr.mxu0 0.0
        %422 = vmatpush1.msra.mxu0 %v245
        %423 = vmatprep.subr.mxu0 0.0
        %424 = vmatpush1.msra.mxu0 %v246
        %425 = vmatprep.subr.mxu0 0.0
        %426 = vmatpush1.msra.mxu0 %v247
        %427 = vmatprep.subr.mxu0 0.0
        %428 = vmatpush1.msra.mxu0 %v248
        %429 = vmatprep.subr.mxu0 0.0
        %430 = vmatpush1.msra.mxu0 %v249
        %431 = vmatprep.subr.mxu0 0.0
        %432 = vmatpush1.msra.mxu0 %v250
        %433 = vmatprep.subr.mxu0 0.0
        %434 = vmatpush1.msra.mxu0 %v251
        %435 = vmatprep.subr.mxu0 0.0
        %436 = vmatpush1.msra.mxu0 %v252
        %437 = vmatprep.subr.mxu0 0.0
        %438 = vmatpush1.msra.mxu0 %v253
        %439 = vmatprep.subr.mxu0 0.0
        %440 = vmatpush1.msra.mxu0 %v254
        %441 = vmatprep.subr.mxu0 0.0
        %442 = vmatpush1.msra.mxu0 %v255
        %443 = vmatprep.subr.mxu0 0.0
        %444 = vmatpush1.msra.mxu0 %v256
        %445 = vmatprep.subr.mxu0 0.0
        %446 = vmatpush1.msra.mxu0 %v257
        %447 = vmatprep.subr.mxu0 0.0
        %448 = vmatpush1.msra.mxu0 %v258
        %449 = vmatprep.subr.mxu0 0.0
        %450 = vmatpush1.msra.mxu0 %v259
        %451 = vmatprep.subr.mxu0 0.0
        %452 = vmatpush1.msra.mxu0 %v260
        %453 = vmatprep.subr.mxu0 0.0
        %454 = vmatpush1.msra.mxu0 %v261
        %455 = vmatprep.subr.mxu0 0.0
        %456 = vmatpush1.msra.mxu0 %v262
        %457 = vmatprep.subr.mxu0 0.0
        %458 = vmatpush1.msra.mxu0 %v263
        %459 = vmatprep.subr.mxu0 0.0
        %460 = vmatpush1.msra.mxu0 %v264
        %461 = vmatprep.subr.mxu0 0.0
        %462 = vmatpush1.msra.mxu0 %v265
        %463 = vmatprep.subr.mxu0 0.0
        %464 = vmatpush1.msra.mxu0 %v266
        %465 = vmatprep.subr.mxu0 0.0
        %466 = vmatpush1.msra.mxu0 %v267
        %467 = vmatprep.subr.mxu0 0.0
        %468 = vmatpush1.msra.mxu0 %v268
        %469 = vmatprep.subr.mxu0 0.0
        %470 = vmatpush1.msra.mxu0 %v269
        %471 = vmatprep.subr.mxu0 0.0
        %472 = vmatpush1.msra.mxu0 %v270
        %473 = vmatprep.subr.mxu0 0.0
        %474 = vmatpush1.msra.mxu0 %v271
        %475 = vmatprep.subr.mxu0 0.0
        %476 = vmatpush1.msra.mxu0 %v272
        %477 = vmatprep.subr.mxu0 0.0
        %478 = vmatpush1.msra.mxu0 %v273
        %479 = vmatprep.mubr.f32.mxu0 %v205
        %480 = vmatmul.mubr.f32.gmra.mrb[0].mxu0 %v204
        %v481 = vpop.f32.mrb[0].mxu0
        %v482 = vadd.f32 %v412, %v481
        %v483 = vpop.f32.mrb[0].mxu0
        %484 = vdwg.mxu0
        %485 = vmatprep.subr.mxu0 0.0
        %486 = vmatpush1.msra.mxu0 %v274
        %487 = vmatprep.subr.mxu0 0.0
        %488 = vmatpush1.msra.mxu0 %v275
        %489 = vmatprep.subr.mxu0 0.0
        %490 = vmatpush1.msra.mxu0 %v276
        %491 = vmatprep.subr.mxu0 0.0
        %492 = vmatpush1.msra.mxu0 %v277
        %493 = vmatprep.subr.mxu0 0.0
        %494 = vmatpush1.msra.mxu0 %v278
        %495 = vmatprep.subr.mxu0 0.0
        %496 = vmatpush1.msra.mxu0 %v279
        %497 = vmatprep.subr.mxu0 0.0
        %498 = vmatpush1.msra.mxu0 %v280
        %499 = vmatprep.subr.mxu0 0.0
        %500 = vmatpush1.msra.mxu0 %v281
        %501 = vmatprep.subr.mxu0 0.0
        %502 = vmatpush1.msra.mxu0 %v282
        %503 = vmatprep.subr.mxu0 0.0
        %504 = vmatpush1.msra.mxu0 %v283
        %505 = vmatprep.subr.mxu0 0.0
        %506 = vmatpush1.msra.mxu0 %v284
        %507 = vmatprep.subr.mxu0 0.0
        %508 = vmatpush1.msra.mxu0 %v285
        %509 = vmatprep.subr.mxu0 0.0
        %510 = vmatpush1.msra.mxu0 %v286
        %511 = vmatprep.subr.mxu0 0.0
        %512 = vmatpush1.msra.mxu0 %v287
        %513 = vmatprep.subr.mxu0 0.0
        %514 = vmatpush1.msra.mxu0 %v288
        %515 = vmatprep.subr.mxu0 0.0
        %516 = vmatpush1.msra.mxu0 %v289
        %517 = vmatprep.subr.mxu0 0.0
        %518 = vmatpush1.msra.mxu0 %v290
        %519 = vmatprep.subr.mxu0 0.0
        %520 = vmatpush1.msra.mxu0 %v291
        %521 = vmatprep.subr.mxu0 0.0
        %522 = vmatpush1.msra.mxu0 %v292
        %523 = vmatprep.subr.mxu0 0.0
        %524 = vmatpush1.msra.mxu0 %v293
        %525 = vmatprep.subr.mxu0 0.0
        %526 = vmatpush1.msra.mxu0 %v294
        %527 = vmatprep.subr.mxu0 0.0
        %528 = vmatpush1.msra.mxu0 %v295
        %529 = vmatprep.subr.mxu0 0.0
        %530 = vmatpush1.msra.mxu0 %v296
        %531 = vmatprep.subr.mxu0 0.0
        %532 = vmatpush1.msra.mxu0 %v297
        %533 = vmatprep.subr.mxu0 0.0
        %534 = vmatpush1.msra.mxu0 %v298
        %535 = vmatprep.subr.mxu0 0.0
        %536 = vmatpush1.msra.mxu0 %v299
        %537 = vmatprep.subr.mxu0 0.0
        %538 = vmatpush1.msra.mxu0 %v300
        %539 = vmatprep.subr.mxu0 0.0
        %540 = vmatpush1.msra.mxu0 %v301
        %541 = vmatprep.subr.mxu0 0.0
        %542 = vmatpush1.msra.mxu0 %v302
        %543 = vmatprep.subr.mxu0 0.0
        %544 = vmatpush1.msra.mxu0 %v303
        %545 = vmatprep.subr.mxu0 0.0
        %546 = vmatpush1.msra.mxu0 %v304
        %547 = vmatprep.subr.mxu0 0.0
        %548 = vmatpush1.msra.mxu0 %v305
        %549 = vmatprep.mubr.f32.mxu0 %v207
        %550 = vmatmul.mubr.f32.gmra.mrb[0].mxu0 %v206
        %v551 = vpop.f32.mrb[0].mxu0
        %v552 = vadd.f32 %v482, %v551
        %v553 = vpop.f32.mrb[0].mxu0
        %554 = vdwg.mxu0
        %555 = vmatprep.subr.mxu0 0.0
        %556 = vmatpush1.msra.mxu0 %v306
        %557 = vmatprep.subr.mxu0 0.0
        %558 = vmatpush1.msra.mxu0 %v307
        %559 = vmatprep.subr.mxu0 0.0
        %560 = vmatpush1.msra.mxu0 %v308
        %561 = vmatprep.subr.mxu0 0.0
        %562 = vmatpush1.msra.mxu0 %v309
        %563 = vmatprep.subr.mxu0 0.0
        %564 = vmatpush1.msra.mxu0 %v310
        %565 = vmatprep.subr.mxu0 0.0
        %566 = vmatpush1.msra.mxu0 %v311
        %567 = vmatprep.subr.mxu0 0.0
        %568 = vmatpush1.msra.mxu0 %v312
        %569 = vmatprep.subr.mxu0 0.0
        %570 = vmatpush1.msra.mxu0 %v313
        %571 = vmatprep.subr.mxu0 0.0
        %572 = vmatpush1.msra.mxu0 %v314
        %573 = vmatprep.subr.mxu0 0.0
        %574 = vmatpush1.msra.mxu0 %v315
        %575 = vmatprep.subr.mxu0 0.0
        %576 = vmatpush1.msra.mxu0 %v316
        %577 = vmatprep.subr.mxu0 0.0
        %578 = vmatpush1.msra.mxu0 %v317
        %579 = vmatprep.subr.mxu0 0.0
        %580 = vmatpush1.msra.mxu0 %v318
        %581 = vmatprep.subr.mxu0 0.0
        %582 = vmatpush1.msra.mxu0 %v319
        %583 = vmatprep.subr.mxu0 0.0
        %584 = vmatpush1.msra.mxu0 %v320
        %585 = vmatprep.subr.mxu0 0.0
        %586 = vmatpush1.msra.mxu0 %v321
        %587 = vmatprep.subr.mxu0 0.0
        %588 = vmatpush1.msra.mxu0 %v322
        %589 = vmatprep.subr.mxu0 0.0
        %590 = vmatpush1.msra.mxu0 %v323
        %591 = vmatprep.subr.mxu0 0.0
        %592 = vmatpush1.msra.mxu0 %v324
        %593 = vmatprep.subr.mxu0 0.0
        %594 = vmatpush1.msra.mxu0 %v325
        %595 = vmatprep.subr.mxu0 0.0
        %596 = vmatpush1.msra.mxu0 %v326
        %597 = vmatprep.subr.mxu0 0.0
        %598 = vmatpush1.msra.mxu0 %v327
        %599 = vmatprep.subr.mxu0 0.0
        %600 = vmatpush1.msra.mxu0 %v328
        %601 = vmatprep.subr.mxu0 0.0
        %602 = vmatpush1.msra.mxu0 %v329
        %603 = vmatprep.subr.mxu0 0.0
        %604 = vmatpush1.msra.mxu0 %v330
        %605 = vmatprep.subr.mxu0 0.0
        %606 = vmatpush1.msra.mxu0 %v331
        %607 = vmatprep.subr.mxu0 0.0
        %608 = vmatpush1.msra.mxu0 %v332
        %609 = vmatprep.subr.mxu0 0.0
        %610 = vmatpush1.msra.mxu0 %v333
        %611 = vmatprep.subr.mxu0 0.0
        %612 = vmatpush1.msra.mxu0 %v334
        %613 = vmatprep.subr.mxu0 0.0
        %614 = vmatpush1.msra.mxu0 %v335
        %615 = vmatprep.subr.mxu0 0.0
        %616 = vmatpush1.msra.mxu0 %v336
        %617 = vmatprep.subr.mxu0 0.0
        %618 = vmatpush1.msra.mxu0 %v337
        %619 = vmatprep.mubr.f32.mxu0 %v209
        %620 = vmatmul.mubr.f32.gmra.mrb[0].mxu0 %v208
        %v621 = vpop.f32.mrb[0].mxu0
        %v622 = vadd.f32 %v552, %v621
        %v623 = vpop.f32.mrb[0].mxu0
        %624 = vdwg.mxu0
        %625 = vst [vmem:[%s201] sm:$0xff] %v622
        %s626 = sand.u32 %s97, 1
        %s627 = scalar_lea.sflag [#allocation4], %s626
        %s628 = sand.u32 %s97, 1
        %s629 = smul.addr %s628, 8
        %s630 = scalar_lea.vmem [#allocation7], %s629
        // Predicated region
        $region41: #{tpu_custom_call.1} parent=31 // pred_check
          %p631 = pneg %p107
        $region42: #{tpu_custom_call.1} parent=31 // pred_check_branch
          %633 = sbr.rel (%p631) target = $region44
        $region43: #{tpu_custom_call.1} parent=31 // pred_region
          %s635 = ssub.s32 128, 128
          %636 = vsyncadd %s627, %s635
          %s637 = smul.addr %s21, 128
          %s638 = scalar_lea.hbm %s3, %s637
          %s640 = sshll.u32 %s630, 4
          %s641 = int_to_ptr.vmem [resolvable:$true] %s640
          %643 = dma.vmem_to_hbm [thread:$0]  %s641, 128, %s638, %s627
        $region44: #{tpu_custom_call.1} parent=31 // pred_fallthru
          _
      $region32: #{tpu_custom_call.1} parent=5 // pred_fallthru
        _
      %p644 = scmp.le.s32.totalorder 2, %s16
      // Predicated region
      $region45: #{tpu_custom_call.1} parent=5 // pred_check
        %p645 = pneg %p644
      $region46: #{tpu_custom_call.1} parent=5 // pred_check_branch
        %647 = sbr.rel (%p645) target = $region48
      $region47: #{tpu_custom_call.1} parent=5 // pred_region
        %s648 = ssub.s32 %s16, 2
        // Predicated region
        $region49: #{tpu_custom_call.1} parent=47 // pred_check
          %p649 = pneg %p113
        $region50: #{tpu_custom_call.1} parent=47 // pred_check_branch
          %651 = sbr.rel (%p649) target = $region52
        $region51: #{tpu_custom_call.1} parent=47 // pred_region
          %s652 = sand.u32 %s98, 1
          %s653 = scalar_lea.sflag [#allocation4], %s652
          %s654 = sand.u32 %s98, 1
          %s655 = smul.addr %s654, 8
          %s656 = scalar_lea.vmem [#allocation7], %s655
          %657 = dma.done %s653, 128
        $region52: #{tpu_custom_call.1} parent=47 // pred_fallthru
          _
      $region48: #{tpu_custom_call.1} parent=5 // pred_fallthru
        _
    $region6: #{tpu_custom_call.1} parent=1 // loop_footer
      %s20 = sadd.s32 1, %s16
    $region7: #{tpu_custom_call.1} parent=1 // loop_footer_branch
      %15 = sbr.rel target = $region3
    $region8: #{tpu_custom_call.1} parent=1 // loop_exit
      _
    %658 = vsyncpa [#allocation3], 1
    %s659 = scalar_lea.sflag [#allocation3], 1
    %660 = vsyncpa %s659, 1
    %661 = vsyncpa [#allocation6], 1
    %662 = vsyncpa [#allocation4], 1
    %s663 = scalar_lea.sflag [#allocation4], 1
    %664 = vsyncpa %s663, 1

// kernel: tpu_custom_call.1
$region0: #{tpu_custom_call.1}
  #allocation0 [shape = 'u32[]', space=smem, size = 0x4, offset = 0x4, fixed_abs, tag = 'smem constant byte address 0x4 - core index']
  #allocation1 [shape = 'u32[144,128]{1,0:T(1,128)}', space=vmem, size = 0x12000, scoped, tag = 'internal scratch']
  %s0 = inlined_call_operand.hbm [shape: f32[16,1024], index: 0, kind: input, shape index: {}]
  %s1 = inlined_call_operand.hbm [shape: f32[1024,128], index: 1, kind: input, shape index: {}]
  %s2 = inlined_call_operand.vmem [shape: f32[1,128], index: 2, kind: input, shape index: {}]
  %s3 = inlined_call_operand.hbm [shape: f32[16,128], index: 3, kind: output, shape index: {}]
  %s4 = sld [smem:[#allocation0]]
  $region53: #{tpu_custom_call.1} parent=0
    _
  %s6 = ssub.s32 1, %s4
  %s7 = scalar_select 0, %s6, %s4
  $region1: #{tpu_custom_call.1} parent=0
    #allocation2 [shape = 'u8[65536]{0}', space=vmem, size = 0x10000, scoped, tag = 'input window, operand 0']
    #allocation3 [shape = 's32[2]{0}', space=sflag, size = 0x8, scoped, tag = 'scoped memory for tpu_custom_call.1']
    #allocation4 [shape = 's32[2]{0}', space=sflag, size = 0x8, scoped, tag = 'scoped memory for tpu_custom_call.1']
    #allocation5 [shape = 'u8[524288]{0}', space=vmem, size = 0x80000, scoped, tag = 'input window, operand 1, single buffered']
    #allocation6 [shape = 's32[1]{0}', space=sflag, size = 0x4, scoped, tag = 'scoped memory for tpu_custom_call.1']
    #allocation7 [shape = 'u8[8192]{0}', space=vmem, size = 0x2000, scoped, tag = 'output window, operand 0']
    %8 = vsyncpa [#allocation3], 0
    %s9 = scalar_lea.sflag [#allocation3], 1
    %10 = vsyncpa %s9, 0
    %11 = vsyncpa [#allocation6], 0
    %12 = vsyncpa [#allocation4], 0
    %s13 = scalar_lea.sflag [#allocation4], 1
    %14 = vsyncpa %s13, 0
    loop: start=0, step=1, limit=4
    $region2: #{tpu_custom_call.1} parent=1 // loop_pre_header
      _
    $region3: #{tpu_custom_call.1} parent=1 // loop_header
      %s16 = sphi 0, %s20
      %p17 = scmp.ge.s32.totalorder %s16, 4
      %s26 = sphi 0, %s28
      %s29 = sphi 0, %s26
      %s30 = sphi 0, %s29
      %s46 = sphi 0, %s30
      %s50 = sphi 0, %s50
      %s52 = sphi 0, %s50
      %s53 = sphi 0, %s52
      %s67 = sphi 0, %s53
      %s71 = sphi 0, %s71
      %s73 = sphi 0, %s71
      %s74 = sphi 0, %s73
      %s88 = sphi 0, %s74
      %s94 = sphi 0, %s96
      %s97 = sphi 0, %s94
      %s98 = sphi 0, %s97
      %s114 = sphi 0, %s98
    $region4: #{tpu_custom_call.1} parent=1 // loop_header_branch
      %19 = sbr.rel (%p17) target = $region8
    $region5: #{tpu_custom_call.1} parent=1 // loop_body
      %s21 = ssub.s32 %s16, 1
      %s22 = ssub.s32 %s16, 2
      %s23 = sadd.s32 %s16, 1
      %s24 = ssub.s32 %s16, %s23
      %p25 = scmp.eq.s32.totalorder %s24, 0
      %s27 = sadd.s32 %s26, 1
      %s28 = scalar_select %p25, %s26, %s27
      %p31 = pneg %p25
      %p32 = scmp.eq.s32.totalorder %s16, 1
      %p33 = por %p31, %p32
      %p34 = scmp.ne.s32.totalorder %s26, %s29
      %p35 = scmp.eq.s32.totalorder %s16, 0
      %p36 = por %p34, %p35
      %p37 = scmp.ne.s32.totalorder %s26, %s29
      %p38 = scmp.eq.s32.totalorder %s21, 1
      %p39 = por %p37, %p38
      %p40 = scmp.ne.s32.totalorder %s29, %s30
      %p41 = scmp.eq.s32.totalorder %s21, 0
      %p42 = por %p40, %p41
      %p43 = scmp.ne.s32.totalorder %s29, %s30
      %p44 = scmp.eq.s32.totalorder %s22, 1
      %p45 = por %p43, %p44
      %p47 = scmp.ne.s32.totalorder %s30, %s46
      %p48 = scmp.eq.s32.totalorder %s22, 0
      %p49 = por %p47, %p48
      %s51 = sadd.s32 %s50, 1
      %p54 = scmp.eq.s32.totalorder %s16, 1
      %p55 = scmp.ne.s32.totalorder %s50, %s52
      %p56 = scmp.eq.s32.totalorder %s16, 0
      %p57 = por %p55, %p56
      %p58 = scmp.ne.s32.totalorder %s50, %s52
      %p59 = scmp.eq.s32.totalorder %s21, 1
      %p60 = por %p58, %p59
      %p61 = scmp.ne.s32.totalorder %s52, %s53
      %p62 = scmp.eq.s32.totalorder %s21, 0
      %p63 = por %p61, %p62
      %p64 = scmp.ne.s32.totalorder %s52, %s53
      %p65 = scmp.eq.s32.totalorder %s22, 1
      %p66 = por %p64, %p65
      %p68 = scmp.ne.s32.totalorder %s53, %s67
      %p69 = scmp.eq.s32.totalorder %s22, 0
      %p70 = por %p68, %p69
      %s72 = sadd.s32 %s71, 1
      %p75 = scmp.eq.s32.totalorder %s16, 1
      %p76 = scmp.ne.s32.totalorder %s71, %s73
      %p77 = scmp.eq.s32.totalorder %s16, 0
      %p78 = por %p76, %p77
      %p79 = scmp.ne.s32.totalorder %s71, %s73
      %p80 = scmp.eq.s32.totalorder %s21, 1
      %p81 = por %p79, %p80
      %p82 = scmp.ne.s32.totalorder %s73, %s74
      %p83 = scmp.eq.s32.totalorder %s21, 0
      %p84 = por %p82, %p83
      %p85 = scmp.ne.s32.totalorder %s73, %s74
      %p86 = scmp.eq.s32.totalorder %s22, 1
      %p87 = por %p85, %p86
      %p89 = scmp.ne.s32.totalorder %s74, %s88
      %p90 = scmp.eq.s32.totalorder %s22, 0
      %p91 = por %p89, %p90
      %s92 = ssub.s32 %s16, %s23
      %p93 = scmp.eq.s32.totalorder %s92, 0
      %s95 = sadd.s32 %s94, 1
      %s96 = scalar_select %p93, %s94, %s95
      %p99 = pneg %p93
      %p100 = scmp.eq.s32.totalorder %s16, 1
      %p101 = por %p99, %p100
      %p102 = scmp.ne.s32.totalorder %s94, %s97
      %p103 = scmp.eq.s32.totalorder %s16, 0
      %p104 = por %p102, %p103
      %p105 = scmp.ne.s32.totalorder %s94, %s97
      %p106 = scmp.eq.s32.totalorder %s21, 1
      %p107 = por %p105, %p106
      %p108 = scmp.ne.s32.totalorder %s97, %s98
      %p109 = scmp.eq.s32.totalorder %s21, 0
      %p110 = por %p108, %p109
      %p111 = scmp.ne.s32.totalorder %s97, %s98
      %p112 = scmp.eq.s32.totalorder %s22, 1
      %p113 = por %p111, %p112
      %p115 = scmp.ne.s32.totalorder %s98, %s114
      %p116 = scmp.eq.s32.totalorder %s22, 0
      %p117 = por %p115, %p116
      %p118 = scmp.le.s32.totalorder 1, %s16
      %p119 = scmp.lt.s32.totalorder %s16, 3
      %p120 = pnand %p118, %p119
      %p121 = pneg %p120
      // Predicated region
      $region9: #{tpu_custom_call.1} parent=5 // pred_check
        _
      $region10: #{tpu_custom_call.1} parent=5 // pred_check_branch
        %123 = sbr.rel (%p120) target = $region12
      $region11: #{tpu_custom_call.1} parent=5 // pred_region
        %s124 = ssub.s32 %s16, 1
        // Predicated region
        $region13: #{tpu_custom_call.1} parent=11 // pred_check
          %p125 = pneg %p63
        $region14: #{tpu_custom_call.1} parent=11 // pred_check_branch
          %127 = sbr.rel (%p125) target = $region16
        $region15: #{tpu_custom_call.1} parent=11 // pred_region
          %s129 = ssub.s32 16384, 16384
          %130 = vsyncadd [#allocation6], %s129
          %s131 = sshll.u32 [#allocation5], 4
          %s132 = int_to_ptr.vmem [resolvable:$true] %s131
          %137 = dma.hbm_to_vmem [thread:$0]  %s1, 16384, %s132, [#allocation6], 128, 128, 8
        $region16: #{tpu_custom_call.1} parent=11 // pred_fallthru
          _
        // Predicated region
        $region17: #{tpu_custom_call.1} parent=11 // pred_check
          %p138 = pneg %p84
        $region18: #{tpu_custom_call.1} parent=11 // pred_check_branch
          %140 = sbr.rel (%p138) target = $region20
        $region19: #{tpu_custom_call.1} parent=11 // pred_region
          _
        $region20: #{tpu_custom_call.1} parent=11 // pred_fallthru
          _
      $region12: #{tpu_custom_call.1} parent=5 // pred_fallthru
        _
      %p141 = scmp.lt.s32.totalorder %s16, 2
      // Predicated region
      $region21: #{tpu_custom_call.1} parent=5 // pred_check
        %p142 = pneg %p141
      $region22: #{tpu_custom_call.1} parent=5 // pred_check_branch
        %144 = sbr.rel (%p142) target = $region24
      $region23: #{tpu_custom_call.1} parent=5 // pred_region
        // Predicated region
        $region25: #{tpu_custom_call.1} parent=23 // pred_check
          %p145 = pneg %p36
        $region26: #{tpu_custom_call.1} parent=23 // pred_check_branch
          %147 = sbr.rel (%p145) target = $region28
        $region27: #{tpu_custom_call.1} parent=23 // pred_region
          %s148 = sand.u32 %s26, 1
          %s149 = scalar_lea.sflag [#allocation3], %s148
          %s150 = sand.u32 %s26, 1
          %s151 = smul.addr %s150, 64
          %s152 = scalar_lea.vmem [#allocation2], %s151
          %s154 = ssub.s32 1024, 1024
          %155 = vsyncadd %s149, %s154
          %s156 = smul.addr %s16, 8
          %s157 = smul.addr %s156, 128
          %s158 = scalar_lea.hbm %s0, %s157
          %s160 = sshll.u32 %s152, 4
          %s161 = int_to_ptr.vmem [resolvable:$true] %s160
          %163 = dma.hbm_to_vmem [thread:$0]  %s158, 1024, %s161, %s149
        $region28: #{tpu_custom_call.1} parent=23 // pred_fallthru
          _
      $region24: #{tpu_custom_call.1} parent=5 // pred_fallthru
        _
      %p164 = scmp.le.s32.totalorder 1, %s16
      %p165 = scmp.lt.s32.totalorder %s16, 3
      %p166 = pnand %p164, %p165
      %p167 = pneg %p166
      // Predicated region
      $region29: #{tpu_custom_call.1} parent=5 // pred_check
        _
      $region30: #{tpu_custom_call.1} parent=5 // pred_check_branch
        %169 = sbr.rel (%p166) target = $region32
      $region31: #{tpu_custom_call.1} parent=5 // pred_region
        %s170 = ssub.s32 %s16, 1
        %s171 = sand.u32 %s29, 1
        %s172 = scalar_lea.sflag [#allocation3], %s171
        %s173 = sand.u32 %s29, 1
        %s174 = smul.addr %s173, 64
        %s175 = scalar_lea.vmem [#allocation2], %s174
        // Predicated region
        $region33: #{tpu_custom_call.1} parent=31 // pred_check
          %p176 = pneg %p42
        $region34: #{tpu_custom_call.1} parent=31 // pred_check_branch
          %178 = sbr.rel (%p176) target = $region36
        $region35: #{tpu_custom_call.1} parent=31 // pred_region
          %179 = dma.done %s172, 1024
        $region36: #{tpu_custom_call.1} parent=31 // pred_fallthru
          _
        // Predicated region
        $region37: #{tpu_custom_call.1} parent=31 // pred_check
          %p180 = pneg %p63
        $region38: #{tpu_custom_call.1} parent=31 // pred_check_branch
          %182 = sbr.rel (%p180) target = $region40
        $region39: #{tpu_custom_call.1} parent=31 // pred_region
          %183 = dma.done [#allocation6], 16384
        $region40: #{tpu_custom_call.1} parent=31 // pred_fallthru
          _
        %s184 = sand.u32 %s29, 1
        %s185 = scalar_lea.sflag [#allocation3], %s184
        %s186 = sand.u32 %s29, 1
        %s187 = smul.addr %s186, 64
        %s188 = scalar_lea.vmem [#allocation2], %s187
        %p189 = pneg %p42
        %p190 = pneg %p39
        %p191 = pneg %p63
        %p192 = pneg %p60
        %p193 = pneg %p84
        %p194 = pneg %p81
        %p195 = pneg %p110
        %p196 = pneg %p107
        %s197 = sand.u32 %s97, 1
        %s198 = scalar_lea.sflag [#allocation4], %s197
        %s199 = sand.u32 %s97, 1
        %s200 = smul.addr %s199, 8
        %s201 = scalar_lea.vmem [#allocation7], %s200
        %v202 = vld [vmem:[%s175] sm:$0xff]
        %v203 = vld [vmem:[%s175 + $0x8] sm:$0xff]
        %v204 = vld [vmem:[%s175 + $0x10] sm:$0xff]
        %v205 = vld [vmem:[%s175 + $0x18] sm:$0xff]
        %v206 = vld [vmem:[%s175 + $0x20] sm:$0xff]
        %v207 = vld [vmem:[%s175 + $0x28] sm:$0xff]
        %v208 = vld [vmem:[%s175 + $0x30] sm:$0xff]
        %v209 = vld [vmem:[%s175 + $0x38] sm:$0xff]
        %v210 = vld [vmem:[#allocation5] sm:$0xff]
        %v211 = vld [vmem:[#allocation5 + $0x8] sm:$0xff]
        %v212 = vld [vmem:[#allocation5 + $0x10] sm:$0xff]
        %v213 = vld [vmem:[#allocation5 + $0x18] sm:$0xff]
        %v214 = vld [vmem:[#allocation5 + $0x20] sm:$0xff]
        %v215 = vld [vmem:[#allocation5 + $0x28] sm:$0xff]
        %v216 = vld [vmem:[#allocation5 + $0x30] sm:$0xff]
        %v217 = vld [vmem:[#allocation5 + $0x38] sm:$0xff]
        %v218 = vld [vmem:[#allocation5 + $0x40] sm:$0xff]
        %v219 = vld [vmem:[#allocation5 + $0x48] sm:$0xff]
        %v220 = vld [vmem:[#allocation5 + $0x50] sm:$0xff]
        %v221 = vld [vmem:[#allocation5 + $0x58] sm:$0xff]
        %v222 = vld [vmem:[#allocation5 + $0x60] sm:$0xff]
        %v223 = vld [vmem:[#allocation5 + $0x68] sm:$0xff]
        %v224 = vld [vmem:[#allocation5 + $0x70] sm:$0xff]
        %v225 = vld [vmem:[#allocation5 + $0x78] sm:$0xff]
        %v226 = vld [vmem:[#allocation5 + $0x80] sm:$0xff]
        %v227 = vld [vmem:[#allocation5 + $0x88] sm:$0xff]
        %v228 = vld [vmem:[#allocation5 + $0x90] sm:$0xff]
        %v229 = vld [vmem:[#allocation5 + $0x98] sm:$0xff]
        %v230 = vld [vmem:[#allocation5 + $0xa0] sm:$0xff]
        %v231 = vld [vmem:[#allocation5 + $0xa8] sm:$0xff]
        %v232 = vld [vmem:[#allocation5 + $0xb0] sm:$0xff]
        %v233 = vld [vmem:[#allocation5 + $0xb8] sm:$0xff]
        %v234 = vld [vmem:[#allocation5 + $0xc0] sm:$0xff]
        %v235 = vld [vmem:[#allocation5 + $0xc8] sm:$0xff]
        %v236 = vld [vmem:[#allocation5 + $0xd0] sm:$0xff]
        %v237 = vld [vmem:[#allocation5 + $0xd8] sm:$0xff]
        %v238 = vld [vmem:[#allocation5 + $0xe0] sm:$0xff]
        %v239 = vld [vmem:[#allocation5 + $0xe8] sm:$0xff]
        %v240 = vld [vmem:[#allocation5 + $0xf0] sm:$0xff]
        %v241 = vld [vmem:[#allocation5 + $0xf8] sm:$0xff]
        %v242 = vld [vmem:[#allocation5 + $0x100] sm:$0xff]
        %v243 = vld [vmem:[#allocation5 + $0x108] sm:$0xff]
        %v244 = vld [vmem:[#allocation5 + $0x110] sm:$0xff]
        %v245 = vld [vmem:[#allocation5 + $0x118] sm:$0xff]
        %v246 = vld [vmem:[#allocation5 + $0x120] sm:$0xff]
        %v247 = vld [vmem:[#allocation5 + $0x128] sm:$0xff]
        %v248 = vld [vmem:[#allocation5 + $0x130] sm:$0xff]
        %v249 = vld [vmem:[#allocation5 + $0x138] sm:$0xff]
        %v250 = vld [vmem:[#allocation5 + $0x140] sm:$0xff]
        %v251 = vld [vmem:[#allocation5 + $0x148] sm:$0xff]
        %v252 = vld [vmem:[#allocation5 + $0x150] sm:$0xff]
        %v253 = vld [vmem:[#allocation5 + $0x158] sm:$0xff]
        %v254 = vld [vmem:[#allocation5 + $0x160] sm:$0xff]
        %v255 = vld [vmem:[#allocation5 + $0x168] sm:$0xff]
        %v256 = vld [vmem:[#allocation5 + $0x170] sm:$0xff]
        %v257 = vld [vmem:[#allocation5 + $0x178] sm:$0xff]
        %v258 = vld [vmem:[#allocation5 + $0x180] sm:$0xff]
        %v259 = vld [vmem:[#allocation5 + $0x188] sm:$0xff]
        %v260 = vld [vmem:[#allocation5 + $0x190] sm:$0xff]
        %v261 = vld [vmem:[#allocation5 + $0x198] sm:$0xff]
        %v262 = vld [vmem:[#allocation5 + $0x1a0] sm:$0xff]
        %v263 = vld [vmem:[#allocation5 + $0x1a8] sm:$0xff]
        %v264 = vld [vmem:[#allocation5 + $0x1b0] sm:$0xff]
        %v265 = vld [vmem:[#allocation5 + $0x1b8] sm:$0xff]
        %v266 = vld [vmem:[#allocation5 + $0x1c0] sm:$0xff]
        %v267 = vld [vmem:[#allocation5 + $0x1c8] sm:$0xff]
        %v268 = vld [vmem:[#allocation5 + $0x1d0] sm:$0xff]
        %v269 = vld [vmem:[#allocation5 + $0x1d8] sm:$0xff]
        %v270 = vld [vmem:[#allocation5 + $0x1e0] sm:$0xff]
        %v271 = vld [vmem:[#allocation5 + $0x1e8] sm:$0xff]
        %v272 = vld [vmem:[#allocation5 + $0x1f0] sm:$0xff]
        %v273 = vld [vmem:[#allocation5 + $0x1f8] sm:$0xff]
        %v274 = vld [vmem:[#allocation5 + $0x200] sm:$0xff]
        %v275 = vld [vmem:[#allocation5 + $0x208] sm:$0xff]
        %v276 = vld [vmem:[#allocation5 + $0x210] sm:$0xff]
        %v277 = vld [vmem:[#allocation5 + $0x218] sm:$0xff]
        %v278 = vld [vmem:[#allocation5 + $0x220] sm:$0xff]
        %v279 = vld [vmem:[#allocation5 + $0x228] sm:$0xff]
        %v280 = vld [vmem:[#allocation5 + $0x230] sm:$0xff]
        %v281 = vld [vmem:[#allocation5 + $0x238] sm:$0xff]
        %v282 = vld [vmem:[#allocation5 + $0x240] sm:$0xff]
        %v283 = vld [vmem:[#allocation5 + $0x248] sm:$0xff]
        %v284 = vld [vmem:[#allocation5 + $0x250] sm:$0xff]
        %v285 = vld [vmem:[#allocation5 + $0x258] sm:$0xff]
        %v286 = vld [vmem:[#allocation5 + $0x260] sm:$0xff]
        %v287 = vld [vmem:[#allocation5 + $0x268] sm:$0xff]
        %v288 = vld [vmem:[#allocation5 + $0x270] sm:$0xff]
        %v289 = vld [vmem:[#allocation5 + $0x278] sm:$0xff]
        %v290 = vld [vmem:[#allocation5 + $0x280] sm:$0xff]
        %v291 = vld [vmem:[#allocation5 + $0x288] sm:$0xff]
        %v292 = vld [vmem:[#allocation5 + $0x290] sm:$0xff]
        %v293 = vld [vmem:[#allocation5 + $0x298] sm:$0xff]
        %v294 = vld [vmem:[#allocation5 + $0x2a0] sm:$0xff]
        %v295 = vld [vmem:[#allocation5 + $0x2a8] sm:$0xff]
        %v296 = vld [vmem:[#allocation5 + $0x2b0] sm:$0xff]
        %v297 = vld [vmem:[#allocation5 + $0x2b8] sm:$0xff]
        %v298 = vld [vmem:[#allocation5 + $0x2c0] sm:$0xff]
        %v299 = vld [vmem:[#allocation5 + $0x2c8] sm:$0xff]
        %v300 = vld [vmem:[#allocation5 + $0x2d0] sm:$0xff]
        %v301 = vld [vmem:[#allocation5 + $0x2d8] sm:$0xff]
        %v302 = vld [vmem:[#allocation5 + $0x2e0] sm:$0xff]
        %v303 = vld [vmem:[#allocation5 + $0x2e8] sm:$0xff]
        %v304 = vld [vmem:[#allocation5 + $0x2f0] sm:$0xff]
        %v305 = vld [vmem:[#allocation5 + $0x2f8] sm:$0xff]
        %v306 = vld [vmem:[#allocation5 + $0x300] sm:$0xff]
        %v307 = vld [vmem:[#allocation5 + $0x308] sm:$0xff]
        %v308 = vld [vmem:[#allocation5 + $0x310] sm:$0xff]
        %v309 = vld [vmem:[#allocation5 + $0x318] sm:$0xff]
        %v310 = vld [vmem:[#allocation5 + $0x320] sm:$0xff]
        %v311 = vld [vmem:[#allocation5 + $0x328] sm:$0xff]
        %v312 = vld [vmem:[#allocation5 + $0x330] sm:$0xff]
        %v313 = vld [vmem:[#allocation5 + $0x338] sm:$0xff]
        %v314 = vld [vmem:[#allocation5 + $0x340] sm:$0xff]
        %v315 = vld [vmem:[#allocation5 + $0x348] sm:$0xff]
        %v316 = vld [vmem:[#allocation5 + $0x350] sm:$0xff]
        %v317 = vld [vmem:[#allocation5 + $0x358] sm:$0xff]
        %v318 = vld [vmem:[#allocation5 + $0x360] sm:$0xff]
        %v319 = vld [vmem:[#allocation5 + $0x368] sm:$0xff]
        %v320 = vld [vmem:[#allocation5 + $0x370] sm:$0xff]
        %v321 = vld [vmem:[#allocation5 + $0x378] sm:$0xff]
        %v322 = vld [vmem:[#allocation5 + $0x380] sm:$0xff]
        %v323 = vld [vmem:[#allocation5 + $0x388] sm:$0xff]
        %v324 = vld [vmem:[#allocation5 + $0x390] sm:$0xff]
        %v325 = vld [vmem:[#allocation5 + $0x398] sm:$0xff]
        %v326 = vld [vmem:[#allocation5 + $0x3a0] sm:$0xff]
        %v327 = vld [vmem:[#allocation5 + $0x3a8] sm:$0xff]
        %v328 = vld [vmem:[#allocation5 + $0x3b0] sm:$0xff]
        %v329 = vld [vmem:[#allocation5 + $0x3b8] sm:$0xff]
        %v330 = vld [vmem:[#allocation5 + $0x3c0] sm:$0xff]
        %v331 = vld [vmem:[#allocation5 + $0x3c8] sm:$0xff]
        %v332 = vld [vmem:[#allocation5 + $0x3d0] sm:$0xff]
        %v333 = vld [vmem:[#allocation5 + $0x3d8] sm:$0xff]
        %v334 = vld [vmem:[#allocation5 + $0x3e0] sm:$0xff]
        %v335 = vld [vmem:[#allocation5 + $0x3e8] sm:$0xff]
        %v336 = vld [vmem:[#allocation5 + $0x3f0] sm:$0xff]
        %v337 = vld [vmem:[#allocation5 + $0x3f8] sm:$0xff]
        %v338 = vld [vmem:[%s2] sm:$0x1]
        %v340 = vlaneseq
        %v341 = vshrl.u32 %v340, 7
        %v342 = vsub.s32 0, %v341
        %v343 = vrot.slane %v338, %v342
        %345 = vmatprep.subr.mxu0 0.0
        %346 = vmatpush1.msra.mxu0 %v210
        %347 = vmatprep.subr.mxu0 0.0
        %348 = vmatpush1.msra.mxu0 %v211
        %349 = vmatprep.subr.mxu0 0.0
        %350 = vmatpush1.msra.mxu0 %v212
        %351 = vmatprep.subr.mxu0 0.0
        %352 = vmatpush1.msra.mxu0 %v213
        %353 = vmatprep.subr.mxu0 0.0
        %354 = vmatpush1.msra.mxu0 %v214
        %355 = vmatprep.subr.mxu0 0.0
        %356 = vmatpush1.msra.mxu0 %v215
        %357 = vmatprep.subr.mxu0 0.0
        %358 = vmatpush1.msra.mxu0 %v216
        %359 = vmatprep.subr.mxu0 0.0
        %360 = vmatpush1.msra.mxu0 %v217
        %361 = vmatprep.subr.mxu0 0.0
        %362 = vmatpush1.msra.mxu0 %v218
        %363 = vmatprep.subr.mxu0 0.0
        %364 = vmatpush1.msra.mxu0 %v219
        %365 = vmatprep.subr.mxu0 0.0
        %366 = vmatpush1.msra.mxu0 %v220
        %367 = vmatprep.subr.mxu0 0.0
        %368 = vmatpush1.msra.mxu0 %v221
        %369 = vmatprep.subr.mxu0 0.0
        %370 = vmatpush1.msra.mxu0 %v222
        %371 = vmatprep.subr.mxu0 0.0
        %372 = vmatpush1.msra.mxu0 %v223
        %373 = vmatprep.subr.mxu0 0.0
        %374 = vmatpush1.msra.mxu0 %v224
        %375 = vmatprep.subr.mxu0 0.0
        %376 = vmatpush1.msra.mxu0 %v225
        %377 = vmatprep.subr.mxu0 0.0
        %378 = vmatpush1.msra.mxu0 %v226
        %379 = vmatprep.subr.mxu0 0.0
        %380 = vmatpush1.msra.mxu0 %v227
        %381 = vmatprep.subr.mxu0 0.0
        %382 = vmatpush1.msra.mxu0 %v228
        %383 = vmatprep.subr.mxu0 0.0
        %384 = vmatpush1.msra.mxu0 %v229
        %385 = vmatprep.subr.mxu0 0.0
        %386 = vmatpush1.msra.mxu0 %v230
        %387 = vmatprep.subr.mxu0 0.0
        %388 = vmatpush1.msra.mxu0 %v231
        %389 = vmatprep.subr.mxu0 0.0
        %390 = vmatpush1.msra.mxu0 %v232
        %391 = vmatprep.subr.mxu0 0.0
        %392 = vmatpush1.msra.mxu0 %v233
        %393 = vmatprep.subr.mxu0 0.0
        %394 = vmatpush1.msra.mxu0 %v234
        %395 = vmatprep.subr.mxu0 0.0
        %396 = vmatpush1.msra.mxu0 %v235
        %397 = vmatprep.subr.mxu0 0.0
        %398 = vmatpush1.msra.mxu0 %v236
        %399 = vmatprep.subr.mxu0 0.0
        %400 = vmatpush1.msra.mxu0 %v237
        %401 = vmatprep.subr.mxu0 0.0
        %402 = vmatpush1.msra.mxu0 %v238
        %403 = vmatprep.subr.mxu0 0.0
        %404 = vmatpush1.msra.mxu0 %v239
        %405 = vmatprep.subr.mxu0 0.0
        %406 = vmatpush1.msra.mxu0 %v240
        %407 = vmatprep.subr.mxu0 0.0
        %408 = vmatpush1.msra.mxu0 %v241
        %409 = vmatprep.mubr.f32.mxu0 %v203
        %410 = vmatmul.mubr.f32.gmra.mrb[0].mxu0 %v202
        %v411 = vpop.f32.mrb[0].mxu0
        %v412 = vadd.f32 %v343, %v411
        %v413 = vpop.f32.mrb[0].mxu0
        %414 = vdwg.mxu0
        %415 = vmatprep.subr.mxu0 0.0
        %416 = vmatpush1.msra.mxu0 %v242
        %417 = vmatprep.subr.mxu0 0.0
        %418 = vmatpush1.msra.mxu0 %v243
        %419 = vmatprep.subr.mxu0 0.0
        %420 = vmatpush1.msra.mxu0 %v244
        %421 = vmatprep.subr.mxu0 0.0
        %422 = vmatpush1.msra.mxu0 %v245
        %423 = vmatprep.subr.mxu0 0.0
        %424 = vmatpush1.msra.mxu0 %v246
        %425 = vmatprep.subr.mxu0 0.0
        %426 = vmatpush1.msra.mxu0 %v247
        %427 = vmatprep.subr.mxu0 0.0
        %428 = vmatpush1.msra.mxu0 %v248
        %429 = vmatprep.subr.mxu0 0.0
        %430 = vmatpush1.msra.mxu0 %v249
        %431 = vmatprep.subr.mxu0 0.0
        %432 = vmatpush1.msra.mxu0 %v250
        %433 = vmatprep.subr.mxu0 0.0
        %434 = vmatpush1.msra.mxu0 %v251
        %435 = vmatprep.subr.mxu0 0.0
        %436 = vmatpush1.msra.mxu0 %v252
        %437 = vmatprep.subr.mxu0 0.0
        %438 = vmatpush1.msra.mxu0 %v253
        %439 = vmatprep.subr.mxu0 0.0
        %440 = vmatpush1.msra.mxu0 %v254
        %441 = vmatprep.subr.mxu0 0.0
        %442 = vmatpush1.msra.mxu0 %v255
        %443 = vmatprep.subr.mxu0 0.0
        %444 = vmatpush1.msra.mxu0 %v256
        %445 = vmatprep.subr.mxu0 0.0
        %446 = vmatpush1.msra.mxu0 %v257
        %447 = vmatprep.subr.mxu0 0.0
        %448 = vmatpush1.msra.mxu0 %v258
        %449 = vmatprep.subr.mxu0 0.0
        %450 = vmatpush1.msra.mxu0 %v259
        %451 = vmatprep.subr.mxu0 0.0
        %452 = vmatpush1.msra.mxu0 %v260
        %453 = vmatprep.subr.mxu0 0.0
        %454 = vmatpush1.msra.mxu0 %v261
        %455 = vmatprep.subr.mxu0 0.0
        %456 = vmatpush1.msra.mxu0 %v262
        %457 = vmatprep.subr.mxu0 0.0
        %458 = vmatpush1.msra.mxu0 %v263
        %459 = vmatprep.subr.mxu0 0.0
        %460 = vmatpush1.msra.mxu0 %v264
        %461 = vmatprep.subr.mxu0 0.0
        %462 = vmatpush1.msra.mxu0 %v265
        %463 = vmatprep.subr.mxu0 0.0
        %464 = vmatpush1.msra.mxu0 %v266
        %465 = vmatprep.subr.mxu0 0.0
        %466 = vmatpush1.msra.mxu0 %v267
        %467 = vmatprep.subr.mxu0 0.0
        %468 = vmatpush1.msra.mxu0 %v268
        %469 = vmatprep.subr.mxu0 0.0
        %470 = vmatpush1.msra.mxu0 %v269
        %471 = vmatprep.subr.mxu0 0.0
        %472 = vmatpush1.msra.mxu0 %v270
        %473 = vmatprep.subr.mxu0 0.0
        %474 = vmatpush1.msra.mxu0 %v271
        %475 = vmatprep.subr.mxu0 0.0
        %476 = vmatpush1.msra.mxu0 %v272
        %477 = vmatprep.subr.mxu0 0.0
        %478 = vmatpush1.msra.mxu0 %v273
        %479 = vmatprep.mubr.f32.mxu0 %v205
        %480 = vmatmul.mubr.f32.gmra.mrb[0].mxu0 %v204
        %v481 = vpop.f32.mrb[0].mxu0
        %v482 = vadd.f32 %v412, %v481
        %v483 = vpop.f32.mrb[0].mxu0
        %484 = vdwg.mxu0
        %485 = vmatprep.subr.mxu0 0.0
        %486 = vmatpush1.msra.mxu0 %v274
        %487 = vmatprep.subr.mxu0 0.0
        %488 = vmatpush1.msra.mxu0 %v275
        %489 = vmatprep.subr.mxu0 0.0
        %490 = vmatpush1.msra.mxu0 %v276
        %491 = vmatprep.subr.mxu0 0.0
        %492 = vmatpush1.msra.mxu0 %v277
        %493 = vmatprep.subr.mxu0 0.0
        %494 = vmatpush1.msra.mxu0 %v278
        %495 = vmatprep.subr.mxu0 0.0
        %496 = vmatpush1.msra.mxu0 %v279
        %497 = vmatprep.subr.mxu0 0.0
        %498 = vmatpush1.msra.mxu0 %v280
        %499 = vmatprep.subr.mxu0 0.0
        %500 = vmatpush1.msra.mxu0 %v281
        %501 = vmatprep.subr.mxu0 0.0
        %502 = vmatpush1.msra.mxu0 %v282
        %503 = vmatprep.subr.mxu0 0.0
        %504 = vmatpush1.msra.mxu0 %v283
        %505 = vmatprep.subr.mxu0 0.0
        %506 = vmatpush1.msra.mxu0 %v284
        %507 = vmatprep.subr.mxu0 0.0
        %508 = vmatpush1.msra.mxu0 %v285
        %509 = vmatprep.subr.mxu0 0.0
        %510 = vmatpush1.msra.mxu0 %v286
        %511 = vmatprep.subr.mxu0 0.0
        %512 = vmatpush1.msra.mxu0 %v287
        %513 = vmatprep.subr.mxu0 0.0
        %514 = vmatpush1.msra.mxu0 %v288
        %515 = vmatprep.subr.mxu0 0.0
        %516 = vmatpush1.msra.mxu0 %v289
        %517 = vmatprep.subr.mxu0 0.0
        %518 = vmatpush1.msra.mxu0 %v290
        %519 = vmatprep.subr.mxu0 0.0
        %520 = vmatpush1.msra.mxu0 %v291
        %521 = vmatprep.subr.mxu0 0.0
        %522 = vmatpush1.msra.mxu0 %v292
        %523 = vmatprep.subr.mxu0 0.0
        %524 = vmatpush1.msra.mxu0 %v293
        %525 = vmatprep.subr.mxu0 0.0
        %526 = vmatpush1.msra.mxu0 %v294
        %527 = vmatprep.subr.mxu0 0.0
        %528 = vmatpush1.msra.mxu0 %v295
        %529 = vmatprep.subr.mxu0 0.0
        %530 = vmatpush1.msra.mxu0 %v296
        %531 = vmatprep.subr.mxu0 0.0
        %532 = vmatpush1.msra.mxu0 %v297
        %533 = vmatprep.subr.mxu0 0.0
        %534 = vmatpush1.msra.mxu0 %v298
        %535 = vmatprep.subr.mxu0 0.0
        %536 = vmatpush1.msra.mxu0 %v299
        %537 = vmatprep.subr.mxu0 0.0
        %538 = vmatpush1.msra.mxu0 %v300
        %539 = vmatprep.subr.mxu0 0.0
        %540 = vmatpush1.msra.mxu0 %v301
        %541 = vmatprep.subr.mxu0 0.0
        %542 = vmatpush1.msra.mxu0 %v302
        %543 = vmatprep.subr.mxu0 0.0
        %544 = vmatpush1.msra.mxu0 %v303
        %545 = vmatprep.subr.mxu0 0.0
        %546 = vmatpush1.msra.mxu0 %v304
        %547 = vmatprep.subr.mxu0 0.0
        %548 = vmatpush1.msra.mxu0 %v305
        %549 = vmatprep.mubr.f32.mxu0 %v207
        %550 = vmatmul.mubr.f32.gmra.mrb[0].mxu0 %v206
        %v551 = vpop.f32.mrb[0].mxu0
        %v552 = vadd.f32 %v482, %v551
        %v553 = vpop.f32.mrb[0].mxu0
        %554 = vdwg.mxu0
        %555 = vmatprep.subr.mxu0 0.0
        %556 = vmatpush1.msra.mxu0 %v306
        %557 = vmatprep.subr.mxu0 0.0
        %558 = vmatpush1.msra.mxu0 %v307
        %559 = vmatprep.subr.mxu0 0.0
        %560 = vmatpush1.msra.mxu0 %v308
        %561 = vmatprep.subr.mxu0 0.0
        %562 = vmatpush1.msra.mxu0 %v309
        %563 = vmatprep.subr.mxu0 0.0
        %564 = vmatpush1.msra.mxu0 %v310
        %565 = vmatprep.subr.mxu0 0.0
        %566 = vmatpush1.msra.mxu0 %v311
        %567 = vmatprep.subr.mxu0 0.0
        %568 = vmatpush1.msra.mxu0 %v312
        %569 = vmatprep.subr.mxu0 0.0
        %570 = vmatpush1.msra.mxu0 %v313
        %571 = vmatprep.subr.mxu0 0.0
        %572 = vmatpush1.msra.mxu0 %v314
        %573 = vmatprep.subr.mxu0 0.0
        %574 = vmatpush1.msra.mxu0 %v315
        %575 = vmatprep.subr.mxu0 0.0
        %576 = vmatpush1.msra.mxu0 %v316
        %577 = vmatprep.subr.mxu0 0.0
        %578 = vmatpush1.msra.mxu0 %v317
        %579 = vmatprep.subr.mxu0 0.0
        %580 = vmatpush1.msra.mxu0 %v318
        %581 = vmatprep.subr.mxu0 0.0
        %582 = vmatpush1.msra.mxu0 %v319
        %583 = vmatprep.subr.mxu0 0.0
        %584 = vmatpush1.msra.mxu0 %v320
        %585 = vmatprep.subr.mxu0 0.0
        %586 = vmatpush1.msra.mxu0 %v321
        %587 = vmatprep.subr.mxu0 0.0
        %588 = vmatpush1.msra.mxu0 %v322
        %589 = vmatprep.subr.mxu0 0.0
        %590 = vmatpush1.msra.mxu0 %v323
        %591 = vmatprep.subr.mxu0 0.0
        %592 = vmatpush1.msra.mxu0 %v324
        %593 = vmatprep.subr.mxu0 0.0
        %594 = vmatpush1.msra.mxu0 %v325
        %595 = vmatprep.subr.mxu0 0.0
        %596 = vmatpush1.msra.mxu0 %v326
        %597 = vmatprep.subr.mxu0 0.0
        %598 = vmatpush1.msra.mxu0 %v327
        %599 = vmatprep.subr.mxu0 0.0
        %600 = vmatpush1.msra.mxu0 %v328
        %601 = vmatprep.subr.mxu0 0.0
        %602 = vmatpush1.msra.mxu0 %v329
        %603 = vmatprep.subr.mxu0 0.0
        %604 = vmatpush1.msra.mxu0 %v330
        %605 = vmatprep.subr.mxu0 0.0
        %606 = vmatpush1.msra.mxu0 %v331
        %607 = vmatprep.subr.mxu0 0.0
        %608 = vmatpush1.msra.mxu0 %v332
        %609 = vmatprep.subr.mxu0 0.0
        %610 = vmatpush1.msra.mxu0 %v333
        %611 = vmatprep.subr.mxu0 0.0
        %612 = vmatpush1.msra.mxu0 %v334
        %613 = vmatprep.subr.mxu0 0.0
        %614 = vmatpush1.msra.mxu0 %v335
        %615 = vmatprep.subr.mxu0 0.0
        %616 = vmatpush1.msra.mxu0 %v336
        %617 = vmatprep.subr.mxu0 0.0
        %618 = vmatpush1.msra.mxu0 %v337
        %619 = vmatprep.mubr.f32.mxu0 %v209
        %620 = vmatmul.mubr.f32.gmra.mrb[0].mxu0 %v208
        %v621 = vpop.f32.mrb[0].mxu0
        %v622 = vadd.f32 %v552, %v621
        %v623 = vpop.f32.mrb[0].mxu0
        %624 = vdwg.mxu0
        %625 = vst [vmem:[%s201] sm:$0xff] %v622
        %s626 = sand.u32 %s97, 1
        %s627 = scalar_lea.sflag [#allocation4], %s626
        %s628 = sand.u32 %s97, 1
        %s629 = smul.addr %s628, 8
        %s630 = scalar_lea.vmem [#allocation7], %s629
        // Predicated region
        $region41: #{tpu_custom_call.1} parent=31 // pred_check
          %p631 = pneg %p107
        $region42: #{tpu_custom_call.1} parent=31 // pred_check_branch
          %633 = sbr.rel (%p631) target = $region44
        $region43: #{tpu_custom_call.1} parent=31 // pred_region
          %s635 = ssub.s32 128, 128
          %636 = vsyncadd %s627, %s635
          %s637 = smul.addr %s21, 128
          %s638 = scalar_lea.hbm %s3, %s637
          %s640 = sshll.u32 %s630, 4
          %s641 = int_to_ptr.vmem [resolvable:$true] %s640
          %643 = dma.vmem_to_hbm [thread:$0]  %s641, 128, %s638, %s627
        $region44: #{tpu_custom_call.1} parent=31 // pred_fallthru
          _
      $region32: #{tpu_custom_call.1} parent=5 // pred_fallthru
        _
      %p644 = scmp.le.s32.totalorder 2, %s16
      // Predicated region
      $region45: #{tpu_custom_call.1} parent=5 // pred_check
        %p645 = pneg %p644
      $region46: #{tpu_custom_call.1} parent=5 // pred_check_branch
        %647 = sbr.rel (%p645) target = $region48
      $region47: #{tpu_custom_call.1} parent=5 // pred_region
        %s648 = ssub.s32 %s16, 2
        // Predicated region
        $region49: #{tpu_custom_call.1} parent=47 // pred_check
          %p649 = pneg %p113
        $region50: #{tpu_custom_call.1} parent=47 // pred_check_branch
          %651 = sbr.rel (%p649) target = $region52
        $region51: #{tpu_custom_call.1} parent=47 // pred_region
          %s652 = sand.u32 %s98, 1
          %s653 = scalar_lea.sflag [#allocation4], %s652
          %s654 = sand.u32 %s98, 1
          %s655 = smul.addr %s654, 8
          %s656 = scalar_lea.vmem [#allocation7], %s655
          %657 = dma.done %s653, 128
        $region52: #{tpu_custom_call.1} parent=47 // pred_fallthru
          _
      $region48: #{tpu_custom_call.1} parent=5 // pred_fallthru
        _
    $region6: #{tpu_custom_call.1} parent=1 // loop_footer
      %s20 = sadd.s32 1, %s16
    $region7: #{tpu_custom_call.1} parent=1 // loop_footer_branch
      %15 = sbr.rel target = $region3
    $region8: #{tpu_custom_call.1} parent=1 // loop_exit
      _
    %658 = vsyncpa [#allocation3], 1
    %s659 = scalar_lea.sflag [#allocation3], 1
    %660 = vsyncpa %s659, 1
    %661 = vsyncpa [#allocation6], 1
    %662 = vsyncpa [#allocation4], 1
    %s663 = scalar_lea.sflag [#allocation4], 1
    %664 = vsyncpa %s663, 1

</llo_original>
